<compile_context>
chip_gen: v7x
topology: tpu7x:2x2x1
jax: 0.10.0
libtpu: 0.0.40
codegen_flags: <defaults>
</compile_context>

<pallas_src>
import functools

import jax
import jax.numpy as jnp
from jax.experimental import pallas as pl
from jax.experimental.pallas import tpu as pltpu


def _round_up(x, m):
    return (x + m - 1) // m * m


# ---------------------------------------------------------------------------
# Pallas kernel: tiled (A @ B) with f32 accumulation + fused bias / LeakyReLU
# ---------------------------------------------------------------------------
def _fused_matmul_kernel(*refs, alpha, has_bias):
    if has_bias:
        a_ref, b_ref, bias_ref, o_ref, acc_ref = refs
    else:
        a_ref, b_ref, o_ref, acc_ref = refs
        bias_ref = None

    k = pl.program_id(2)

    @pl.when(k == 0)
    def _init():
        acc_ref[...] = jnp.zeros_like(acc_ref)

    acc_ref[...] += jnp.dot(a_ref[...], b_ref[...],
                            preferred_element_type=jnp.float32)

    @pl.when(k == pl.num_programs(2) - 1)
    def _finalize():
        out = acc_ref[...]
        if has_bias:                       # static Python branch
            out = out + bias_ref[...]
        if alpha != 1.0:                   # static: skip identity activation
            out = jnp.where(out >= 0.0, out, alpha * out)
        o_ref[...] = out.astype(o_ref.dtype)


def fused_matmul(a, b, bias=None, alpha=1.0, out_dtype=jnp.float32,
                 tm_cap=256, tn_cap=256, tk_cap=512):
    """[M, K] @ [K, N] (+bias, LeakyReLU) on the MXU with an (M, N, K) grid."""
    M, K = a.shape
    K2, N = b.shape
    assert K == K2

    # Tile sizes: lane-dense (multiples of 128), capped for VMEM headroom
    # (fits comfortably under the default scoped VMEM limit on v5e/v6e/v7x).
    TM = min(tm_cap, _round_up(M, 128))
    TN = min(tn_cap, _round_up(N, 128))
    TK = min(tk_cap, _round_up(K, 128))
    Mp, Np, Kp = _round_up(M, TM), _round_up(N, TN), _round_up(K, TK)

    # Zero padding: rows of A / cols of B contribute 0 to the dot; padded
    # output rows/cols are sliced away below.
    a_p = jnp.pad(a.astype(jnp.bfloat16), ((0, Mp - M), (0, Kp - K)))
    b_p = jnp.pad(b.astype(jnp.bfloat16), ((0, Kp - K), (0, Np - N)))

    inputs = [a_p, b_p]
    in_specs = [
        pl.BlockSpec((TM, TK), lambda i, j, k: (i, k)),
        pl.BlockSpec((TK, TN), lambda i, j, k: (k, j)),
    ]
    has_bias = bias is not None
    if has_bias:
        bias_p = jnp.pad(bias.reshape(1, N).astype(jnp.float32),
                         ((0, 0), (0, Np - N)))
        inputs.append(bias_p)
        in_specs.append(pl.BlockSpec((1, TN), lambda i, j, k: (0, j)))

    kernel = functools.partial(_fused_matmul_kernel, alpha=float(alpha),
                               has_bias=has_bias)
    out = pl.pallas_call(
        kernel,
        out_shape=jax.ShapeDtypeStruct((Mp, Np), out_dtype),
        grid=(Mp // TM, Np // TN, Kp // TK),
        in_specs=in_specs,
        out_specs=pl.BlockSpec((TM, TN), lambda i, j, k: (i, j)),
        scratch_shapes=[pltpu.VMEM((TM, TN), jnp.float32)],
        compiler_params=pltpu.CompilerParams(
            dimension_semantics=("parallel", "parallel", "arbitrary")),
    )(*inputs)
    return out[:M, :N]


# ---------------------------------------------------------------------------
# im2col glue (pure reshapes / strided slices, stays in plain JAX)
# ---------------------------------------------------------------------------
def _im2col(x_nhwc, kh, kw, stride, pad):
    x = jnp.pad(x_nhwc, ((0, 0), (pad, pad), (pad, pad), (0, 0)))
    N, H, W, C = x.shape
    Ho = (H - kh) // stride + 1
    Wo = (W - kw) // stride + 1
    taps = []
    for i in range(kh):
        for j in range(kw):
            taps.append(x[:, i:i + Ho * stride:stride, j:j + Wo * stride:stride, :])
    # [N, Ho, Wo, kh*kw, C] with K index = (i*kw + j)*C + c
    p = jnp.stack(taps, axis=3)
    return p.reshape(N * Ho * Wo, kh * kw * C), (N, Ho, Wo)


def conv2d(x_nhwc, w_oihw, b, *, stride, pad, alpha, out_dtype=jnp.float32):
    """Conv2d via im2col + fused Pallas GEMM. Weight is PyTorch OIHW layout."""
    Cout, Cin, kh, kw = w_oihw.shape
    patches, (N, Ho, Wo) = _im2col(x_nhwc.astype(jnp.bfloat16), kh, kw, stride, pad)
    # OIHW -> (kh, kw, Cin, Cout) -> [K, Cout], matching the patch K ordering.
    w_mat = jnp.transpose(w_oihw, (2, 3, 1, 0)).reshape(kh * kw * Cin, Cout)
    out = fused_matmul(patches, w_mat, bias=b, alpha=alpha, out_dtype=out_dtype)
    return out.reshape(N, Ho, Wo, Cout)


# ---------------------------------------------------------------------------
# Discriminator forward
# ---------------------------------------------------------------------------
def discriminator_forward(params, x_nchw, *, leaky_alpha=0.01):
    h = jnp.transpose(x_nchw, (0, 2, 3, 1)).astype(jnp.bfloat16)  # NCHW -> NHWC
    for (w, b) in params["main"]:
        # stride-2 4x4 conv + LeakyReLU, bf16 activations between layers.
        h = conv2d(h, w, b, stride=2, pad=1, alpha=leaky_alpha,
                   out_dtype=jnp.bfloat16)

    # conv1: 3x3, stride 1, pad 1, no bias, no activation (alpha=1 -> identity)
    out_src = conv2d(h, params["conv1_w"], None, stride=1, pad=1, alpha=1.0,
                     out_dtype=jnp.float32)
    out_src = jnp.transpose(out_src, (0, 3, 1, 2))  # back to NCHW

    # conv2: kernel spans the whole remaining spatial extent -> plain dense.
    N = h.shape[0]
    w2 = params["conv2_w"]                      # (c_dim, C, ksz, ksz)
    c_dim = w2.shape[0]
    h_flat = h.reshape(N, -1)                   # NHWC flatten == (kh, kw, cin)
    w2_mat = jnp.transpose(w2, (2, 3, 1, 0)).reshape(-1, c_dim)
    out_cls = fused_matmul(h_flat, w2_mat, bias=None, alpha=1.0,
                           out_dtype=jnp.float32)          # (N, c_dim)
    return out_src, out_cls


# ---------------------------------------------------------------------------
# Deterministic parameter init (shapes mirror the PyTorch module)
# ---------------------------------------------------------------------------
def init_params(key, image_size, conv_dim, c_dim, repeat_num):
    params = {"main": []}
    cin, cout = 3, conv_dim
    for _ in range(repeat_num):
        key, kw_, kb_ = jax.random.split(key, 3)
        w = jax.random.normal(kw_, (cout, cin, 4, 4), jnp.float32) * 0.05
        b = jax.random.normal(kb_, (cout,), jnp.float32) * 0.05
        params["main"].append((w, b))
        cin, cout = cout, cout * 2
    curr_dim = cin
    ksz = image_size // (2 ** repeat_num)
    key, k1, k2 = jax.random.split(key, 3)
    params["conv1_w"] = jax.random.normal(k1, (1, curr_dim, 3, 3), jnp.float32) * 0.05
    params["conv2_w"] = jax.random.normal(k2, (c_dim, curr_dim, ksz, ksz), jnp.float32) * 0.05
    return params


# ---------------------------------------------------------------------------
# Pure-JAX f32 reference (lax.conv) for the correctness check
# ---------------------------------------------------------------------------
def _ref_conv(x_nhwc, w_oihw, b, stride, pad):
    w_hwio = jnp.transpose(w_oihw, (2, 3, 1, 0))
    y = jax.lax.conv_general_dilated(
        x_nhwc, w_hwio, (stride, stride), [(pad, pad), (pad, pad)],
        dimension_numbers=("NHWC", "HWIO", "NHWC"),
        precision=jax.lax.Precision.HIGHEST)
    return y if b is None else y + b


def ref_forward(params, x_nchw, *, leaky_alpha=0.01):
    h = jnp.transpose(x_nchw, (0, 2, 3, 1))
    for (w, b) in params["main"]:
        h = _ref_conv(h, w, b, 2, 1)
        h = jnp.where(h >= 0.0, h, leaky_alpha * h)
    out_src = jnp.transpose(_ref_conv(h, params["conv1_w"], None, 1, 1), (0, 3, 1, 2))
    out_cls = _ref_conv(h, params["conv2_w"], None, 1, 0)
    return out_src, out_cls.reshape(out_cls.shape[0], -1)


if __name__ == "__main__":
    # Small config consistent with the module: image_size=16, conv_dim=8,
    # c_dim=5, repeat_num=3  => spatial 16 -> 8 -> 4 -> 2, conv2 kernel = 2.
    image_size, conv_dim, c_dim, repeat_num = 16, 8, 5, 3
    batch = 2

    key = jax.random.PRNGKey(0)
    key, kx = jax.random.split(key)
    x = jax.random.normal(kx, (batch, 3, image_size, image_size), jnp.float32)
    params = init_params(key, image_size, conv_dim, c_dim, repeat_num)

    fwd = jax.jit(lambda p, xx: discriminator_forward(p, xx))
    out_src, out_cls = fwd(params, x)
    jax.block_until_ready((out_src, out_cls))

    assert out_src.shape == (batch, 1, image_size // 2 ** repeat_num,
                             image_size // 2 ** repeat_num)
    assert out_cls.shape == (batch, c_dim)

    # Correctness vs. f32 reference (kernel path runs bf16 MXU, f32 accum).
    ref_src, ref_cls = ref_forward(params, x)
    assert jnp.allclose(out_src, ref_src, atol=2e-2, rtol=2e-2)
    assert jnp.allclose(out_cls, ref_cls, atol=2e-2, rtol=2e-2)

    print("KERNEL_OK")
</pallas_src>

<mosaic_0001>
module attributes {stable_mosaic.version = 11 : i64} {
  func.func @_fused_matmul_kernel(%arg0: i32, %arg1: i32, %arg2: i32, %arg3: memref<128x128xbf16, #tpu.memory_space<vmem>>, %arg4: memref<128x128xbf16, #tpu.memory_space<vmem>>, %arg5: memref<1x128xf32, #tpu.memory_space<vmem>>, %arg6: memref<128x128xbf16, #tpu.memory_space<vmem>>, %arg7: memref<128x128xf32, #tpu.memory_space<vmem>>) attributes {dimension_semantics = [#tpu.dimension_semantics<parallel>, #tpu.dimension_semantics<parallel>, #tpu.dimension_semantics<arbitrary>], iteration_bounds = array<i64: 1, 1, 1>, scalar_prefetch = 0 : i64, scratch_operands = 1 : i64, tpu.core_type = #tpu.core_type<tc>, window_params = [{transform_indices = @transform_0, window_bounds = array<i64: 128, 128>}, {transform_indices = @transform_1, window_bounds = array<i64: 128, 128>}, {transform_indices = @transform_2, window_bounds = array<i64: 1, 128>}, {transform_indices = @transform_3, window_bounds = array<i64: 128, 128>}]} {
    %c0_i32 = arith.constant 0 : i32
    %0 = arith.cmpi eq, %arg2, %c0_i32 : i32
    %1 = arith.extui %0 : i1 to i32
    %c0_i32_0 = arith.constant 0 : i32
    %2 = arith.cmpi ne, %1, %c0_i32_0 : i32
    scf.if %2 {
      %cst_10 = arith.constant 0.000000e+00 : f32
      %12 = vector.broadcast %cst_10 : f32 to vector<128x128xf32>
      %c0_11 = arith.constant 0 : index
      %c0_12 = arith.constant 0 : index
      %13 = vector.load %arg7[%c0_11, %c0_12] : memref<128x128xf32, #tpu.memory_space<vmem>>, vector<128x128xf32>
      tpu.vector_store %arg7[%c0_11, %c0_12], %12 {strides = array<i32>} : memref<128x128xf32, #tpu.memory_space<vmem>>, vector<128x128xf32>,
    } else {
    }
    %c0 = arith.constant 0 : index
    %c0_1 = arith.constant 0 : index
    %3 = vector.load %arg7[%c0, %c0_1] : memref<128x128xf32, #tpu.memory_space<vmem>>, vector<128x128xf32>
    %c0_2 = arith.constant 0 : index
    %c0_3 = arith.constant 0 : index
    %4 = vector.load %arg3[%c0_2, %c0_3] : memref<128x128xbf16, #tpu.memory_space<vmem>>, vector<128x128xbf16>
    %c0_4 = arith.constant 0 : index
    %c0_5 = arith.constant 0 : index
    %5 = vector.load %arg4[%c0_4, %c0_5] : memref<128x128xbf16, #tpu.memory_space<vmem>>, vector<128x128xbf16>
    %cst = arith.constant dense<0.000000e+00> : vector<128x128xf32>
    %6 = tpu.matmul %4, %5, %cst {dimension_numbers = #tpu.dot_dimension_numbers<[1], [0], [0], [1], [0, 0, 1, 1], [], []>} : vector<128x128xbf16>, vector<128x128xbf16>, vector<128x128xf32> -> vector<128x128xf32>
    %7 = arith.addf %3, %6 : vector<128x128xf32>
    %c0_6 = arith.constant 0 : index
    %c0_7 = arith.constant 0 : index
    %8 = vector.load %arg7[%c0_6, %c0_7] : memref<128x128xf32, #tpu.memory_space<vmem>>, vector<128x128xf32>
    tpu.vector_store %arg7[%c0_6, %c0_7], %7 {strides = array<i32>} : memref<128x128xf32, #tpu.memory_space<vmem>>, vector<128x128xf32>,
    %c0_i32_8 = arith.constant 0 : i32
    %9 = arith.cmpi eq, %arg2, %c0_i32_8 : i32
    %10 = arith.extui %9 : i1 to i32
    %c0_i32_9 = arith.constant 0 : i32
    %11 = arith.cmpi ne, %10, %c0_i32_9 : i32
    scf.if %11 {
      %c0_10 = arith.constant 0 : index
      %c0_11 = arith.constant 0 : index
      %12 = vector.load %arg7[%c0_10, %c0_11] : memref<128x128xf32, #tpu.memory_space<vmem>>, vector<128x128xf32>
      %c0_12 = arith.constant 0 : index
      %c0_13 = arith.constant 0 : index
      %13 = vector.load %arg5[%c0_12, %c0_13] : memref<1x128xf32, #tpu.memory_space<vmem>>, vector<1x128xf32>
      %14 = vector.broadcast %13 : vector<1x128xf32> to vector<128x128xf32>
      %15 = arith.addf %12, %14 : vector<128x128xf32>
      %cst_14 = arith.constant 0.000000e+00 : f32
      %16 = vector.broadcast %cst_14 : f32 to vector<128x128xf32>
      %17 = arith.cmpf oge, %15, %16 : vector<128x128xf32>
      %cst_15 = arith.constant 0.00999999977 : f32
      %18 = vector.broadcast %cst_15 : f32 to vector<128x128xf32>
      %19 = arith.mulf %18, %15 : vector<128x128xf32>
      %20 = arith.select %17, %15, %19 : vector<128x128xi1>, vector<128x128xf32>
      %21 = arith.truncf %20 : vector<128x128xf32> to vector<128x128xbf16>
      %c0_16 = arith.constant 0 : index
      %c0_17 = arith.constant 0 : index
      %22 = vector.load %arg6[%c0_16, %c0_17] : memref<128x128xbf16, #tpu.memory_space<vmem>>, vector<128x128xbf16>
      tpu.vector_store %arg6[%c0_16, %c0_17], %21 {strides = array<i32>} : memref<128x128xbf16, #tpu.memory_space<vmem>>, vector<128x128xbf16>,
    } else {
    }
    return
  }
  func.func @transform_0(%arg0: i32, %arg1: i32, %arg2: i32) -> (i32, i32) {
    %c0_i32 = arith.constant 0 : i32
    return %arg0, %arg2 : i32, i32
  }
  func.func @transform_1(%arg0: i32, %arg1: i32, %arg2: i32) -> (i32, i32) {
    %c0_i32 = arith.constant 0 : i32
    return %arg2, %arg1 : i32, i32
  }
  func.func @transform_2(%arg0: i32, %arg1: i32, %arg2: i32) -> (i32, i32) {
    %c0_i32 = arith.constant 0 : i32
    %c0_i32_0 = arith.constant 0 : i32
    return %c0_i32, %arg1 : i32, i32
  }
  func.func @transform_3(%arg0: i32, %arg1: i32, %arg2: i32) -> (i32, i32) {
    %c0_i32 = arith.constant 0 : i32
    return %arg0, %arg1 : i32, i32
  }
}

module attributes {stable_mosaic.version = 11 : i64} {
  func.func @_fused_matmul_kernel(%arg0: i32, %arg1: i32, %arg2: i32, %arg3: memref<128x256xbf16, #tpu.memory_space<vmem>>, %arg4: memref<256x128xbf16, #tpu.memory_space<vmem>>, %arg5: memref<1x128xf32, #tpu.memory_space<vmem>>, %arg6: memref<128x128xbf16, #tpu.memory_space<vmem>>, %arg7: memref<128x128xf32, #tpu.memory_space<vmem>>) attributes {dimension_semantics = [#tpu.dimension_semantics<parallel>, #tpu.dimension_semantics<parallel>, #tpu.dimension_semantics<arbitrary>], iteration_bounds = array<i64: 1, 1, 1>, scalar_prefetch = 0 : i64, scratch_operands = 1 : i64, tpu.core_type = #tpu.core_type<tc>, window_params = [{transform_indices = @transform_0, window_bounds = array<i64: 128, 256>}, {transform_indices = @transform_1, window_bounds = array<i64: 256, 128>}, {transform_indices = @transform_2, window_bounds = array<i64: 1, 128>}, {transform_indices = @transform_3, window_bounds = array<i64: 128, 128>}]} {
    %c0_i32 = arith.constant 0 : i32
    %0 = arith.cmpi eq, %arg2, %c0_i32 : i32
    %1 = arith.extui %0 : i1 to i32
    %c0_i32_0 = arith.constant 0 : i32
    %2 = arith.cmpi ne, %1, %c0_i32_0 : i32
    scf.if %2 {
      %cst_10 = arith.constant 0.000000e+00 : f32
      %12 = vector.broadcast %cst_10 : f32 to vector<128x128xf32>
      %c0_11 = arith.constant 0 : index
      %c0_12 = arith.constant 0 : index
      %13 = vector.load %arg7[%c0_11, %c0_12] : memref<128x128xf32, #tpu.memory_space<vmem>>, vector<128x128xf32>
      tpu.vector_store %arg7[%c0_11, %c0_12], %12 {strides = array<i32>} : memref<128x128xf32, #tpu.memory_space<vmem>>, vector<128x128xf32>,
    } else {
    }
    %c0 = arith.constant 0 : index
    %c0_1 = arith.constant 0 : index
    %3 = vector.load %arg7[%c0, %c0_1] : memref<128x128xf32, #tpu.memory_space<vmem>>, vector<128x128xf32>
    %c0_2 = arith.constant 0 : index
    %c0_3 = arith.constant 0 : index
    %4 = vector.load %arg3[%c0_2, %c0_3] : memref<128x256xbf16, #tpu.memory_space<vmem>>, vector<128x256xbf16>
    %c0_4 = arith.constant 0 : index
    %c0_5 = arith.constant 0 : index
    %5 = vector.load %arg4[%c0_4, %c0_5] : memref<256x128xbf16, #tpu.memory_space<vmem>>, vector<256x128xbf16>
    %cst = arith.constant dense<0.000000e+00> : vector<128x128xf32>
    %6 = tpu.matmul %4, %5, %cst {dimension_numbers = #tpu.dot_dimension_numbers<[1], [0], [0], [1], [0, 0, 1, 1], [], []>} : vector<128x256xbf16>, vector<256x128xbf16>, vector<128x128xf32> -> vector<128x128xf32>
    %7 = arith.addf %3, %6 : vector<128x128xf32>
    %c0_6 = arith.constant 0 : index
    %c0_7 = arith.constant 0 : index
    %8 = vector.load %arg7[%c0_6, %c0_7] : memref<128x128xf32, #tpu.memory_space<vmem>>, vector<128x128xf32>
    tpu.vector_store %arg7[%c0_6, %c0_7], %7 {strides = array<i32>} : memref<128x128xf32, #tpu.memory_space<vmem>>, vector<128x128xf32>,
    %c0_i32_8 = arith.constant 0 : i32
    %9 = arith.cmpi eq, %arg2, %c0_i32_8 : i32
    %10 = arith.extui %9 : i1 to i32
    %c0_i32_9 = arith.constant 0 : i32
    %11 = arith.cmpi ne, %10, %c0_i32_9 : i32
    scf.if %11 {
      %c0_10 = arith.constant 0 : index
      %c0_11 = arith.constant 0 : index
      %12 = vector.load %arg7[%c0_10, %c0_11] : memref<128x128xf32, #tpu.memory_space<vmem>>, vector<128x128xf32>
      %c0_12 = arith.constant 0 : index
      %c0_13 = arith.constant 0 : index
      %13 = vector.load %arg5[%c0_12, %c0_13] : memref<1x128xf32, #tpu.memory_space<vmem>>, vector<1x128xf32>
      %14 = vector.broadcast %13 : vector<1x128xf32> to vector<128x128xf32>
      %15 = arith.addf %12, %14 : vector<128x128xf32>
      %cst_14 = arith.constant 0.000000e+00 : f32
      %16 = vector.broadcast %cst_14 : f32 to vector<128x128xf32>
      %17 = arith.cmpf oge, %15, %16 : vector<128x128xf32>
      %cst_15 = arith.constant 0.00999999977 : f32
      %18 = vector.broadcast %cst_15 : f32 to vector<128x128xf32>
      %19 = arith.mulf %18, %15 : vector<128x128xf32>
      %20 = arith.select %17, %15, %19 : vector<128x128xi1>, vector<128x128xf32>
      %21 = arith.truncf %20 : vector<128x128xf32> to vector<128x128xbf16>
      %c0_16 = arith.constant 0 : index
      %c0_17 = arith.constant 0 : index
      %22 = vector.load %arg6[%c0_16, %c0_17] : memref<128x128xbf16, #tpu.memory_space<vmem>>, vector<128x128xbf16>
      tpu.vector_store %arg6[%c0_16, %c0_17], %21 {strides = array<i32>} : memref<128x128xbf16, #tpu.memory_space<vmem>>, vector<128x128xbf16>,
    } else {
    }
    return
  }
  func.func @transform_0(%arg0: i32, %arg1: i32, %arg2: i32) -> (i32, i32) {
    %c0_i32 = arith.constant 0 : i32
    return %arg0, %arg2 : i32, i32
  }
  func.func @transform_1(%arg0: i32, %arg1: i32, %arg2: i32) -> (i32, i32) {
    %c0_i32 = arith.constant 0 : i32
    return %arg2, %arg1 : i32, i32
  }
  func.func @transform_2(%arg0: i32, %arg1: i32, %arg2: i32) -> (i32, i32) {
    %c0_i32 = arith.constant 0 : i32
    %c0_i32_0 = arith.constant 0 : i32
    return %c0_i32, %arg1 : i32, i32
  }
  func.func @transform_3(%arg0: i32, %arg1: i32, %arg2: i32) -> (i32, i32) {
    %c0_i32 = arith.constant 0 : i32
    return %arg0, %arg1 : i32, i32
  }
}

module attributes {stable_mosaic.version = 11 : i64} {
  func.func @_fused_matmul_kernel(%arg0: i32, %arg1: i32, %arg2: i32, %arg3: memref<128x384xbf16, #tpu.memory_space<vmem>>, %arg4: memref<384x128xbf16, #tpu.memory_space<vmem>>, %arg5: memref<128x128xf32, #tpu.memory_space<vmem>>, %arg6: memref<128x128xf32, #tpu.memory_space<vmem>>) attributes {dimension_semantics = [#tpu.dimension_semantics<parallel>, #tpu.dimension_semantics<parallel>, #tpu.dimension_semantics<arbitrary>], iteration_bounds = array<i64: 1, 1, 1>, scalar_prefetch = 0 : i64, scratch_operands = 1 : i64, tpu.core_type = #tpu.core_type<tc>, window_params = [{transform_indices = @transform_0, window_bounds = array<i64: 128, 384>}, {transform_indices = @transform_1, window_bounds = array<i64: 384, 128>}, {transform_indices = @transform_2, window_bounds = array<i64: 128, 128>}]} {
    %c0_i32 = arith.constant 0 : i32
    %0 = arith.cmpi eq, %arg2, %c0_i32 : i32
    %1 = arith.extui %0 : i1 to i32
    %c0_i32_0 = arith.constant 0 : i32
    %2 = arith.cmpi ne, %1, %c0_i32_0 : i32
    scf.if %2 {
      %cst_10 = arith.constant 0.000000e+00 : f32
      %12 = vector.broadcast %cst_10 : f32 to vector<128x128xf32>
      %c0_11 = arith.constant 0 : index
      %c0_12 = arith.constant 0 : index
      %13 = vector.load %arg6[%c0_11, %c0_12] : memref<128x128xf32, #tpu.memory_space<vmem>>, vector<128x128xf32>
      tpu.vector_store %arg6[%c0_11, %c0_12], %12 {strides = array<i32>} : memref<128x128xf32, #tpu.memory_space<vmem>>, vector<128x128xf32>,
    } else {
    }
    %c0 = arith.constant 0 : index
    %c0_1 = arith.constant 0 : index
    %3 = vector.load %arg6[%c0, %c0_1] : memref<128x128xf32, #tpu.memory_space<vmem>>, vector<128x128xf32>
    %c0_2 = arith.constant 0 : index
    %c0_3 = arith.constant 0 : index
    %4 = vector.load %arg3[%c0_2, %c0_3] : memref<128x384xbf16, #tpu.memory_space<vmem>>, vector<128x384xbf16>
    %c0_4 = arith.constant 0 : index
    %c0_5 = arith.constant 0 : index
    %5 = vector.load %arg4[%c0_4, %c0_5] : memref<384x128xbf16, #tpu.memory_space<vmem>>, vector<384x128xbf16>
    %cst = arith.constant dense<0.000000e+00> : vector<128x128xf32>
    %6 = tpu.matmul %4, %5, %cst {dimension_numbers = #tpu.dot_dimension_numbers<[1], [0], [0], [1], [0, 0, 1, 1], [], []>} : vector<128x384xbf16>, vector<384x128xbf16>, vector<128x128xf32> -> vector<128x128xf32>
    %7 = arith.addf %3, %6 : vector<128x128xf32>
    %c0_6 = arith.constant 0 : index
    %c0_7 = arith.constant 0 : index
    %8 = vector.load %arg6[%c0_6, %c0_7] : memref<128x128xf32, #tpu.memory_space<vmem>>, vector<128x128xf32>
    tpu.vector_store %arg6[%c0_6, %c0_7], %7 {strides = array<i32>} : memref<128x128xf32, #tpu.memory_space<vmem>>, vector<128x128xf32>,
    %c0_i32_8 = arith.constant 0 : i32
    %9 = arith.cmpi eq, %arg2, %c0_i32_8 : i32
    %10 = arith.extui %9 : i1 to i32
    %c0_i32_9 = arith.constant 0 : i32
    %11 = arith.cmpi ne, %10, %c0_i32_9 : i32
    scf.if %11 {
      %c0_10 = arith.constant 0 : index
      %c0_11 = arith.constant 0 : index
      %12 = vector.load %arg6[%c0_10, %c0_11] : memref<128x128xf32, #tpu.memory_space<vmem>>, vector<128x128xf32>
      %c0_12 = arith.constant 0 : index
      %c0_13 = arith.constant 0 : index
      %13 = vector.load %arg5[%c0_12, %c0_13] : memref<128x128xf32, #tpu.memory_space<vmem>>, vector<128x128xf32>
      tpu.vector_store %arg5[%c0_12, %c0_13], %12 {strides = array<i32>} : memref<128x128xf32, #tpu.memory_space<vmem>>, vector<128x128xf32>,
    } else {
    }
    return
  }
  func.func @transform_0(%arg0: i32, %arg1: i32, %arg2: i32) -> (i32, i32) {
    %c0_i32 = arith.constant 0 : i32
    return %arg0, %arg2 : i32, i32
  }
  func.func @transform_1(%arg0: i32, %arg1: i32, %arg2: i32) -> (i32, i32) {
    %c0_i32 = arith.constant 0 : i32
    return %arg2, %arg1 : i32, i32
  }
  func.func @transform_2(%arg0: i32, %arg1: i32, %arg2: i32) -> (i32, i32) {
    %c0_i32 = arith.constant 0 : i32
    return %arg0, %arg1 : i32, i32
  }
}

module attributes {stable_mosaic.version = 11 : i64} {
  func.func @_fused_matmul_kernel(%arg0: i32, %arg1: i32, %arg2: i32, %arg3: memref<128x128xbf16, #tpu.memory_space<vmem>>, %arg4: memref<128x128xbf16, #tpu.memory_space<vmem>>, %arg5: memref<128x128xf32, #tpu.memory_space<vmem>>, %arg6: memref<128x128xf32, #tpu.memory_space<vmem>>) attributes {dimension_semantics = [#tpu.dimension_semantics<parallel>, #tpu.dimension_semantics<parallel>, #tpu.dimension_semantics<arbitrary>], iteration_bounds = array<i64: 1, 1, 1>, scalar_prefetch = 0 : i64, scratch_operands = 1 : i64, tpu.core_type = #tpu.core_type<tc>, window_params = [{transform_indices = @transform_0, window_bounds = array<i64: 128, 128>}, {transform_indices = @transform_1, window_bounds = array<i64: 128, 128>}, {transform_indices = @transform_2, window_bounds = array<i64: 128, 128>}]} {
    %c0_i32 = arith.constant 0 : i32
    %0 = arith.cmpi eq, %arg2, %c0_i32 : i32
    %1 = arith.extui %0 : i1 to i32
    %c0_i32_0 = arith.constant 0 : i32
    %2 = arith.cmpi ne, %1, %c0_i32_0 : i32
    scf.if %2 {
      %cst_10 = arith.constant 0.000000e+00 : f32
      %12 = vector.broadcast %cst_10 : f32 to vector<128x128xf32>
      %c0_11 = arith.constant 0 : index
      %c0_12 = arith.constant 0 : index
      %13 = vector.load %arg6[%c0_11, %c0_12] : memref<128x128xf32, #tpu.memory_space<vmem>>, vector<128x128xf32>
      tpu.vector_store %arg6[%c0_11, %c0_12], %12 {strides = array<i32>} : memref<128x128xf32, #tpu.memory_space<vmem>>, vector<128x128xf32>,
    } else {
    }
    %c0 = arith.constant 0 : index
    %c0_1 = arith.constant 0 : index
    %3 = vector.load %arg6[%c0, %c0_1] : memref<128x128xf32, #tpu.memory_space<vmem>>, vector<128x128xf32>
    %c0_2 = arith.constant 0 : index
    %c0_3 = arith.constant 0 : index
    %4 = vector.load %arg3[%c0_2, %c0_3] : memref<128x128xbf16, #tpu.memory_space<vmem>>, vector<128x128xbf16>
    %c0_4 = arith.constant 0 : index
    %c0_5 = arith.constant 0 : index
    %5 = vector.load %arg4[%c0_4, %c0_5] : memref<128x128xbf16, #tpu.memory_space<vmem>>, vector<128x128xbf16>
    %cst = arith.constant dense<0.000000e+00> : vector<128x128xf32>
    %6 = tpu.matmul %4, %5, %cst {dimension_numbers = #tpu.dot_dimension_numbers<[1], [0], [0], [1], [0, 0, 1, 1], [], []>} : vector<128x128xbf16>, vector<128x128xbf16>, vector<128x128xf32> -> vector<128x128xf32>
    %7 = arith.addf %3, %6 : vector<128x128xf32>
    %c0_6 = arith.constant 0 : index
    %c0_7 = arith.constant 0 : index
    %8 = vector.load %arg6[%c0_6, %c0_7] : memref<128x128xf32, #tpu.memory_space<vmem>>, vector<128x128xf32>
    tpu.vector_store %arg6[%c0_6, %c0_7], %7 {strides = array<i32>} : memref<128x128xf32, #tpu.memory_space<vmem>>, vector<128x128xf32>,
    %c0_i32_8 = arith.constant 0 : i32
    %9 = arith.cmpi eq, %arg2, %c0_i32_8 : i32
    %10 = arith.extui %9 : i1 to i32
    %c0_i32_9 = arith.constant 0 : i32
    %11 = arith.cmpi ne, %10, %c0_i32_9 : i32
    scf.if %11 {
      %c0_10 = arith.constant 0 : index
      %c0_11 = arith.constant 0 : index
      %12 = vector.load %arg6[%c0_10, %c0_11] : memref<128x128xf32, #tpu.memory_space<vmem>>, vector<128x128xf32>
      %c0_12 = arith.constant 0 : index
      %c0_13 = arith.constant 0 : index
      %13 = vector.load %arg5[%c0_12, %c0_13] : memref<128x128xf32, #tpu.memory_space<vmem>>, vector<128x128xf32>
      tpu.vector_store %arg5[%c0_12, %c0_13], %12 {strides = array<i32>} : memref<128x128xf32, #tpu.memory_space<vmem>>, vector<128x128xf32>,
    } else {
    }
    return
  }
  func.func @transform_0(%arg0: i32, %arg1: i32, %arg2: i32) -> (i32, i32) {
    %c0_i32 = arith.constant 0 : i32
    return %arg0, %arg2 : i32, i32
  }
  func.func @transform_1(%arg0: i32, %arg1: i32, %arg2: i32) -> (i32, i32) {
    %c0_i32 = arith.constant 0 : i32
    return %arg2, %arg1 : i32, i32
  }
  func.func @transform_2(%arg0: i32, %arg1: i32, %arg2: i32) -> (i32, i32) {
    %c0_i32 = arith.constant 0 : i32
    return %arg0, %arg1 : i32, i32
  }
}

</mosaic_0001>

<llo_original>
// kernel: _lambda_.5
$region0: #{_lambda_.5}
  #allocation0 [shape = 'u32[]', space=smem, size = 0x4, offset = 0x4, fixed_abs, tag = 'smem constant byte address 0x4 - core index']
  #allocation1 [shape = 'u32[144,128]{1,0:T(1,128)}', space=vmem, size = 0x12000, scoped, tag = 'internal scratch']
  #allocation2 [shape = 'f32[128,128]{1,0:T(8,128)}', space=vmem, size = 0x10000, scoped, tag = 'scratch operand']
  %s0 = inlined_call_operand.vmem [shape: bf16[128,128], index: 0, kind: input, shape index: {}]
  %s1 = inlined_call_operand.vmem [shape: bf16[128,128], index: 1, kind: input, shape index: {}]
  %s2 = inlined_call_operand.vmem [shape: f32[1,128], index: 2, kind: input, shape index: {}]
  %s3 = inlined_call_operand.vmem [shape: bf16[128,128], index: 3, kind: output, shape index: {}]
  %s4 = sld [smem:[#allocation0]]
  $region30: #{_lambda_.5} parent=0
    _
  %s6 = ssub.s32 1, %s4
  %s7 = scalar_select 0, %s6, %s4
  // Predicated region
  $region2: #{_lambda_.5} parent=0 // pred_check
    _
  $region3: #{_lambda_.5} parent=0 // pred_check_branch
    %9 = sbr.rel (0) target = $region5
  $region4: #{_lambda_.5} parent=0 // pred_region
    _
  $region5: #{_lambda_.5} parent=0 // pred_fallthru
    _
  // Predicated region
  $region6: #{_lambda_.5} parent=0 // pred_check
    _
  $region7: #{_lambda_.5} parent=0 // pred_check_branch
    %11 = sbr.rel (0) target = $region9
  $region8: #{_lambda_.5} parent=0 // pred_region
    _
  $region9: #{_lambda_.5} parent=0 // pred_fallthru
    _
  // Predicated region
  $region10: #{_lambda_.5} parent=0 // pred_check
    _
  $region11: #{_lambda_.5} parent=0 // pred_check_branch
    %13 = sbr.rel (0) target = $region13
  $region12: #{_lambda_.5} parent=0 // pred_region
    _
  $region13: #{_lambda_.5} parent=0 // pred_fallthru
    _
  %p15 = scmp.eq.s32.totalorder 0, 0
  // Predicated region
  $region14: #{_lambda_.5} parent=0 // pred_check
    %p16 = pneg %p15
  $region15: #{_lambda_.5} parent=0 // pred_check_branch
    %18 = sbr.rel (%p16) target = $region17
  $region16: #{_lambda_.5} parent=0 // pred_region
    %19 = vst [vmem:[#allocation2] sm:$0xff] 0.0
    %20 = vst [vmem:[#allocation2 + $0x8] sm:$0xff] 0.0
    %21 = vst [vmem:[#allocation2 + $0x10] sm:$0xff] 0.0
    %22 = vst [vmem:[#allocation2 + $0x18] sm:$0xff] 0.0
    %23 = vst [vmem:[#allocation2 + $0x20] sm:$0xff] 0.0
    %24 = vst [vmem:[#allocation2 + $0x28] sm:$0xff] 0.0
    %25 = vst [vmem:[#allocation2 + $0x30] sm:$0xff] 0.0
    %26 = vst [vmem:[#allocation2 + $0x38] sm:$0xff] 0.0
    %27 = vst [vmem:[#allocation2 + $0x40] sm:$0xff] 0.0
    %28 = vst [vmem:[#allocation2 + $0x48] sm:$0xff] 0.0
    %29 = vst [vmem:[#allocation2 + $0x50] sm:$0xff] 0.0
    %30 = vst [vmem:[#allocation2 + $0x58] sm:$0xff] 0.0
    %31 = vst [vmem:[#allocation2 + $0x60] sm:$0xff] 0.0
    %32 = vst [vmem:[#allocation2 + $0x68] sm:$0xff] 0.0
    %33 = vst [vmem:[#allocation2 + $0x70] sm:$0xff] 0.0
    %34 = vst [vmem:[#allocation2 + $0x78] sm:$0xff] 0.0
  $region17: #{_lambda_.5} parent=0 // pred_fallthru
    _
  %v35 = vld [vmem:[#allocation2] sm:$0xff]
  %v36 = vld [vmem:[#allocation2 + $0x8] sm:$0xff]
  %v37 = vld [vmem:[#allocation2 + $0x10] sm:$0xff]
  %v38 = vld [vmem:[#allocation2 + $0x18] sm:$0xff]
  %v39 = vld [vmem:[#allocation2 + $0x20] sm:$0xff]
  %v40 = vld [vmem:[#allocation2 + $0x28] sm:$0xff]
  %v41 = vld [vmem:[#allocation2 + $0x30] sm:$0xff]
  %v42 = vld [vmem:[#allocation2 + $0x38] sm:$0xff]
  %v43 = vld [vmem:[#allocation2 + $0x40] sm:$0xff]
  %v44 = vld [vmem:[#allocation2 + $0x48] sm:$0xff]
  %v45 = vld [vmem:[#allocation2 + $0x50] sm:$0xff]
  %v46 = vld [vmem:[#allocation2 + $0x58] sm:$0xff]
  %v47 = vld [vmem:[#allocation2 + $0x60] sm:$0xff]
  %v48 = vld [vmem:[#allocation2 + $0x68] sm:$0xff]
  %v49 = vld [vmem:[#allocation2 + $0x70] sm:$0xff]
  %v50 = vld [vmem:[#allocation2 + $0x78] sm:$0xff]
  %v51 = vld [vmem:[%s0] sm:$0xf]
  %v52 = vld [vmem:[%s0 + $0x4] sm:$0xf]
  %v53 = vld [vmem:[%s0 + $0x8] sm:$0xf]
  %v54 = vld [vmem:[%s0 + $0xc] sm:$0xf]
  %v55 = vld [vmem:[%s0 + $0x10] sm:$0xf]
  %v56 = vld [vmem:[%s0 + $0x14] sm:$0xf]
  %v57 = vld [vmem:[%s0 + $0x18] sm:$0xf]
  %v58 = vld [vmem:[%s0 + $0x1c] sm:$0xf]
  %v59 = vld [vmem:[%s0 + $0x20] sm:$0xf]
  %v60 = vld [vmem:[%s0 + $0x24] sm:$0xf]
  %v61 = vld [vmem:[%s0 + $0x28] sm:$0xf]
  %v62 = vld [vmem:[%s0 + $0x2c] sm:$0xf]
  %v63 = vld [vmem:[%s0 + $0x30] sm:$0xf]
  %v64 = vld [vmem:[%s0 + $0x34] sm:$0xf]
  %v65 = vld [vmem:[%s0 + $0x38] sm:$0xf]
  %v66 = vld [vmem:[%s0 + $0x3c] sm:$0xf]
  %v67 = vld [vmem:[%s1] sm:$0xf]
  %v68 = vld [vmem:[%s1 + $0x4] sm:$0xf]
  %v69 = vld [vmem:[%s1 + $0x8] sm:$0xf]
  %v70 = vld [vmem:[%s1 + $0xc] sm:$0xf]
  %v71 = vld [vmem:[%s1 + $0x10] sm:$0xf]
  %v72 = vld [vmem:[%s1 + $0x14] sm:$0xf]
  %v73 = vld [vmem:[%s1 + $0x18] sm:$0xf]
  %v74 = vld [vmem:[%s1 + $0x1c] sm:$0xf]
  %v75 = vld [vmem:[%s1 + $0x20] sm:$0xf]
  %v76 = vld [vmem:[%s1 + $0x24] sm:$0xf]
  %v77 = vld [vmem:[%s1 + $0x28] sm:$0xf]
  %v78 = vld [vmem:[%s1 + $0x2c] sm:$0xf]
  %v79 = vld [vmem:[%s1 + $0x30] sm:$0xf]
  %v80 = vld [vmem:[%s1 + $0x34] sm:$0xf]
  %v81 = vld [vmem:[%s1 + $0x38] sm:$0xf]
  %v82 = vld [vmem:[%s1 + $0x3c] sm:$0xf]
  %v99 = vunpack.c.l.b16 %v51
  %v100 = vunpack.c.l.b16 %v52
  %v101 = vunpack.c.l.b16 %v53
  %v102 = vunpack.c.l.b16 %v54
  %v103 = vunpack.c.l.b16 %v55
  %v104 = vunpack.c.l.b16 %v56
  %v105 = vunpack.c.l.b16 %v57
  %v106 = vunpack.c.l.b16 %v58
  %v107 = vunpack.c.l.b16 %v59
  %v108 = vunpack.c.l.b16 %v60
  %v109 = vunpack.c.l.b16 %v61
  %v110 = vunpack.c.l.b16 %v62
  %v111 = vunpack.c.l.b16 %v63
  %v112 = vunpack.c.l.b16 %v64
  %v113 = vunpack.c.l.b16 %v65
  %v114 = vunpack.c.l.b16 %v66
  %v115 = vpack.c.b16 %v100, %v99
  %v116 = vpack.c.b16 %v102, %v101
  %v117 = vpack.c.b16 %v104, %v103
  %v118 = vpack.c.b16 %v106, %v105
  %v119 = vpack.c.b16 %v108, %v107
  %v120 = vpack.c.b16 %v110, %v109
  %v121 = vpack.c.b16 %v112, %v111
  %v122 = vpack.c.b16 %v114, %v113
  %v147 = vunpack.c.l.b16 %v67
  %v148 = vunpack.c.l.b16 %v68
  %v149 = vunpack.c.l.b16 %v69
  %v150 = vunpack.c.l.b16 %v70
  %v151 = vunpack.c.l.b16 %v71
  %v152 = vunpack.c.l.b16 %v72
  %v153 = vunpack.c.l.b16 %v73
  %v154 = vunpack.c.l.b16 %v74
  %v155 = vunpack.c.l.b16 %v75
  %v156 = vunpack.c.l.b16 %v76
  %v157 = vunpack.c.l.b16 %v77
  %v158 = vunpack.c.l.b16 %v78
  %v159 = vunpack.c.l.b16 %v79
  %v160 = vunpack.c.l.b16 %v80
  %v161 = vunpack.c.l.b16 %v81
  %v162 = vunpack.c.l.b16 %v82
  %v163 = vpack.c.b16 %v148, %v147
  %v164 = vpack.c.b16 %v150, %v149
  %v165 = vpack.c.b16 %v152, %v151
  %v166 = vpack.c.b16 %v154, %v153
  %v167 = vpack.c.b16 %v156, %v155
  %v168 = vpack.c.b16 %v158, %v157
  %v169 = vpack.c.b16 %v160, %v159
  %v170 = vpack.c.b16 %v162, %v161
  %179 = vmatprep.subr.bf16.mxu0 0
  %180 = vmatpush1.bf16.msra.mxu0 %v163
  %181 = vmatprep.subr.bf16.mxu0 0
  %182 = vmatpush1.bf16.msra.mxu0 %v164
  %183 = vmatprep.subr.bf16.mxu0 0
  %184 = vmatpush1.bf16.msra.mxu0 %v165
  %185 = vmatprep.subr.bf16.mxu0 0
  %186 = vmatpush1.bf16.msra.mxu0 %v166
  %187 = vmatprep.subr.bf16.mxu0 0
  %188 = vmatpush1.bf16.msra.mxu0 %v167
  %189 = vmatprep.subr.bf16.mxu0 0
  %190 = vmatpush1.bf16.msra.mxu0 %v168
  %191 = vmatprep.subr.bf16.mxu0 0
  %192 = vmatpush1.bf16.msra.mxu0 %v169
  %193 = vmatprep.subr.bf16.mxu0 0
  %194 = vmatpush1.bf16.msra.mxu0 %v170
  %195 = vmatprep.subr.bf16.mxu0 0
  %196 = vmatpush1.bf16.msra.mxu0 0
  %197 = vmatprep.subr.bf16.mxu0 0
  %198 = vmatpush1.bf16.msra.mxu0 0
  %199 = vmatprep.subr.bf16.mxu0 0
  %200 = vmatpush1.bf16.msra.mxu0 0
  %201 = vmatprep.subr.bf16.mxu0 0
  %202 = vmatpush1.bf16.msra.mxu0 0
  %203 = vmatprep.subr.bf16.mxu0 0
  %204 = vmatpush1.bf16.msra.mxu0 0
  %205 = vmatprep.subr.bf16.mxu0 0
  %206 = vmatpush1.bf16.msra.mxu0 0
  %207 = vmatprep.subr.bf16.mxu0 0
  %208 = vmatpush1.bf16.msra.mxu0 0
  %209 = vmatprep.subr.bf16.mxu0 0
  %210 = vmatpush1.bf16.msra.mxu0 0
  %211 = vmatprep.mubr.bf16.mxu0 0
  %212 = vmatmul.mubr.bf16.gmra.mrb[0].mxu0 %v115
  %v213 = vpop.f32.mrb[0].mxu0
  %v214 = vadd.f32 0.0, %v213
  %v215 = vpop.f32.mrb[0].mxu0
  %v216 = vpop.f32.mrb[0].mxu0
  %v217 = vadd.f32 0.0, %v216
  %v218 = vpop.f32.mrb[0].mxu0
  %219 = vmatprep.mubr.bf16.mxu0 0
  %220 = vmatmul.mubr.bf16.gmra.mrb[0].mxu0 %v116
  %v221 = vpop.f32.mrb[0].mxu0
  %v222 = vadd.f32 0.0, %v221
  %v223 = vpop.f32.mrb[0].mxu0
  %v224 = vpop.f32.mrb[0].mxu0
  %v225 = vadd.f32 0.0, %v224
  %v226 = vpop.f32.mrb[0].mxu0
  %227 = vmatprep.mubr.bf16.mxu0 0
  %228 = vmatmul.mubr.bf16.gmra.mrb[0].mxu0 %v117
  %v229 = vpop.f32.mrb[0].mxu0
  %v230 = vadd.f32 0.0, %v229
  %v231 = vpop.f32.mrb[0].mxu0
  %v232 = vpop.f32.mrb[0].mxu0
  %v233 = vadd.f32 0.0, %v232
  %v234 = vpop.f32.mrb[0].mxu0
  %235 = vmatprep.mubr.bf16.mxu0 0
  %236 = vmatmul.mubr.bf16.gmra.mrb[0].mxu0 %v118
  %v237 = vpop.f32.mrb[0].mxu0
  %v238 = vadd.f32 0.0, %v237
  %v239 = vpop.f32.mrb[0].mxu0
  %v240 = vpop.f32.mrb[0].mxu0
  %v241 = vadd.f32 0.0, %v240
  %v242 = vpop.f32.mrb[0].mxu0
  %243 = vmatprep.mubr.bf16.mxu0 0
  %244 = vmatmul.mubr.bf16.gmra.mrb[0].mxu0 %v119
  %v245 = vpop.f32.mrb[0].mxu0
  %v246 = vadd.f32 0.0, %v245
  %v247 = vpop.f32.mrb[0].mxu0
  %v248 = vpop.f32.mrb[0].mxu0
  %v249 = vadd.f32 0.0, %v248
  %v250 = vpop.f32.mrb[0].mxu0
  %251 = vmatprep.mubr.bf16.mxu0 0
  %252 = vmatmul.mubr.bf16.gmra.mrb[0].mxu0 %v120
  %v253 = vpop.f32.mrb[0].mxu0
  %v254 = vadd.f32 0.0, %v253
  %v255 = vpop.f32.mrb[0].mxu0
  %v256 = vpop.f32.mrb[0].mxu0
  %v257 = vadd.f32 0.0, %v256
  %v258 = vpop.f32.mrb[0].mxu0
  %259 = vmatprep.mubr.bf16.mxu0 0
  %260 = vmatmul.mubr.bf16.gmra.mrb[0].mxu0 %v121
  %v261 = vpop.f32.mrb[0].mxu0
  %v262 = vadd.f32 0.0, %v261
  %v263 = vpop.f32.mrb[0].mxu0
  %v264 = vpop.f32.mrb[0].mxu0
  %v265 = vadd.f32 0.0, %v264
  %v266 = vpop.f32.mrb[0].mxu0
  %267 = vmatprep.mubr.bf16.mxu0 0
  %268 = vmatmul.mubr.bf16.gmra.mrb[0].mxu0 %v122
  %v269 = vpop.f32.mrb[0].mxu0
  %v270 = vadd.f32 0.0, %v269
  %v271 = vpop.f32.mrb[0].mxu0
  %v272 = vpop.f32.mrb[0].mxu0
  %v273 = vadd.f32 0.0, %v272
  %v274 = vpop.f32.mrb[0].mxu0
  %275 = vdwg.mxu0
  %v276 = vadd.f32 %v35, %v214
  %v277 = vadd.f32 %v36, %v217
  %v278 = vadd.f32 %v37, %v222
  %v279 = vadd.f32 %v38, %v225
  %v280 = vadd.f32 %v39, %v230
  %v281 = vadd.f32 %v40, %v233
  %v282 = vadd.f32 %v41, %v238
  %v283 = vadd.f32 %v42, %v241
  %v284 = vadd.f32 %v43, %v246
  %v285 = vadd.f32 %v44, %v249
  %v286 = vadd.f32 %v45, %v254
  %v287 = vadd.f32 %v46, %v257
  %v288 = vadd.f32 %v47, %v262
  %v289 = vadd.f32 %v48, %v265
  %v290 = vadd.f32 %v49, %v270
  %v291 = vadd.f32 %v50, %v273
  %292 = vst [vmem:[#allocation2] sm:$0xff] %v276
  %293 = vst [vmem:[#allocation2 + $0x8] sm:$0xff] %v277
  %294 = vst [vmem:[#allocation2 + $0x10] sm:$0xff] %v278
  %295 = vst [vmem:[#allocation2 + $0x18] sm:$0xff] %v279
  %296 = vst [vmem:[#allocation2 + $0x20] sm:$0xff] %v280
  %297 = vst [vmem:[#allocation2 + $0x28] sm:$0xff] %v281
  %298 = vst [vmem:[#allocation2 + $0x30] sm:$0xff] %v282
  %299 = vst [vmem:[#allocation2 + $0x38] sm:$0xff] %v283
  %300 = vst [vmem:[#allocation2 + $0x40] sm:$0xff] %v284
  %301 = vst [vmem:[#allocation2 + $0x48] sm:$0xff] %v285
  %302 = vst [vmem:[#allocation2 + $0x50] sm:$0xff] %v286
  %303 = vst [vmem:[#allocation2 + $0x58] sm:$0xff] %v287
  %304 = vst [vmem:[#allocation2 + $0x60] sm:$0xff] %v288
  %305 = vst [vmem:[#allocation2 + $0x68] sm:$0xff] %v289
  %306 = vst [vmem:[#allocation2 + $0x70] sm:$0xff] %v290
  %307 = vst [vmem:[#allocation2 + $0x78] sm:$0xff] %v291
  // Predicated region
  $region18: #{_lambda_.5} parent=0 // pred_check
    %p308 = pneg %p15
  $region19: #{_lambda_.5} parent=0 // pred_check_branch
    %310 = sbr.rel (%p308) target = $region21
  $region20: #{_lambda_.5} parent=0 // pred_region
    %v311 = vld [vmem:[#allocation2] sm:$0xff]
    %v312 = vld [vmem:[#allocation2 + $0x8] sm:$0xff]
    %v313 = vld [vmem:[#allocation2 + $0x10] sm:$0xff]
    %v314 = vld [vmem:[#allocation2 + $0x18] sm:$0xff]
    %v315 = vld [vmem:[#allocation2 + $0x20] sm:$0xff]
    %v316 = vld [vmem:[#allocation2 + $0x28] sm:$0xff]
    %v317 = vld [vmem:[#allocation2 + $0x30] sm:$0xff]
    %v318 = vld [vmem:[#allocation2 + $0x38] sm:$0xff]
    %v319 = vld [vmem:[#allocation2 + $0x40] sm:$0xff]
    %v320 = vld [vmem:[#allocation2 + $0x48] sm:$0xff]
    %v321 = vld [vmem:[#allocation2 + $0x50] sm:$0xff]
    %v322 = vld [vmem:[#allocation2 + $0x58] sm:$0xff]
    %v323 = vld [vmem:[#allocation2 + $0x60] sm:$0xff]
    %v324 = vld [vmem:[#allocation2 + $0x68] sm:$0xff]
    %v325 = vld [vmem:[#allocation2 + $0x70] sm:$0xff]
    %v326 = vld [vmem:[#allocation2 + $0x78] sm:$0xff]
    %v327 = vld [vmem:[%s2] sm:$0x1]
    %v329 = vlaneseq
    %v330 = vshrl.u32 %v329, 7
    %v331 = vsub.s32 0, %v330
    %v332 = vrot.slane %v327, %v331
    %v334 = vadd.f32 %v311, %v332
    %v335 = vadd.f32 %v312, %v332
    %v336 = vadd.f32 %v313, %v332
    %v337 = vadd.f32 %v314, %v332
    %v338 = vadd.f32 %v315, %v332
    %v339 = vadd.f32 %v316, %v332
    %v340 = vadd.f32 %v317, %v332
    %v341 = vadd.f32 %v318, %v332
    %v342 = vadd.f32 %v319, %v332
    %v343 = vadd.f32 %v320, %v332
    %v344 = vadd.f32 %v321, %v332
    %v345 = vadd.f32 %v322, %v332
    %v346 = vadd.f32 %v323, %v332
    %v347 = vadd.f32 %v324, %v332
    %v348 = vadd.f32 %v325, %v332
    %v349 = vadd.f32 %v326, %v332
    %vm350 = vcmp.ge.f32.partialorder %v334, 0.0
    %vm351 = vcmp.ge.f32.partialorder %v335, 0.0
    %vm352 = vcmp.ge.f32.partialorder %v336, 0.0
    %vm353 = vcmp.ge.f32.partialorder %v337, 0.0
    %vm354 = vcmp.ge.f32.partialorder %v338, 0.0
    %vm355 = vcmp.ge.f32.partialorder %v339, 0.0
    %vm356 = vcmp.ge.f32.partialorder %v340, 0.0
    %vm357 = vcmp.ge.f32.partialorder %v341, 0.0
    %vm358 = vcmp.ge.f32.partialorder %v342, 0.0
    %vm359 = vcmp.ge.f32.partialorder %v343, 0.0
    %vm360 = vcmp.ge.f32.partialorder %v344, 0.0
    %vm361 = vcmp.ge.f32.partialorder %v345, 0.0
    %vm362 = vcmp.ge.f32.partialorder %v346, 0.0
    %vm363 = vcmp.ge.f32.partialorder %v347, 0.0
    %vm364 = vcmp.ge.f32.partialorder %v348, 0.0
    %vm365 = vcmp.ge.f32.partialorder %v349, 0.0
    %v366 = vmul.f32 %v334, 0.01
    %v367 = vmul.f32 %v335, 0.01
    %v368 = vmul.f32 %v336, 0.01
    %v369 = vmul.f32 %v337, 0.01
    %v370 = vmul.f32 %v338, 0.01
    %v371 = vmul.f32 %v339, 0.01
    %v372 = vmul.f32 %v340, 0.01
    %v373 = vmul.f32 %v341, 0.01
    %v374 = vmul.f32 %v342, 0.01
    %v375 = vmul.f32 %v343, 0.01
    %v376 = vmul.f32 %v344, 0.01
    %v377 = vmul.f32 %v345, 0.01
    %v378 = vmul.f32 %v346, 0.01
    %v379 = vmul.f32 %v347, 0.01
    %v380 = vmul.f32 %v348, 0.01
    %v381 = vmul.f32 %v349, 0.01
    %v382 = vsel %vm350, %v334, %v366
    %v383 = vsel %vm351, %v335, %v367
    %v384 = vsel %vm352, %v336, %v368
    %v385 = vsel %vm353, %v337, %v369
    %v386 = vsel %vm354, %v338, %v370
    %v387 = vsel %vm355, %v339, %v371
    %v388 = vsel %vm356, %v340, %v372
    %v389 = vsel %vm357, %v341, %v373
    %v390 = vsel %vm358, %v342, %v374
    %v391 = vsel %vm359, %v343, %v375
    %v392 = vsel %vm360, %v344, %v376
    %v393 = vsel %vm361, %v345, %v377
    %v394 = vsel %vm362, %v346, %v378
    %v395 = vsel %vm363, %v347, %v379
    %v396 = vsel %vm364, %v348, %v380
    %v397 = vsel %vm365, %v349, %v381
    %v398 = vpack.c.bf16 %v383, %v382
    %v399 = vpack.c.bf16 %v385, %v384
    %v400 = vpack.c.bf16 %v387, %v386
    %v401 = vpack.c.bf16 %v389, %v388
    %v402 = vpack.c.bf16 %v391, %v390
    %v403 = vpack.c.bf16 %v393, %v392
    %v404 = vpack.c.bf16 %v395, %v394
    %v405 = vpack.c.bf16 %v397, %v396
    %v414 = vunpack.c.l.b16 %v398
    %v415 = vunpack.c.h.b16 %v398
    %v416 = vunpack.c.l.b16 %v399
    %v417 = vunpack.c.h.b16 %v399
    %v418 = vunpack.c.l.b16 %v400
    %v419 = vunpack.c.h.b16 %v400
    %v420 = vunpack.c.l.b16 %v401
    %v421 = vunpack.c.h.b16 %v401
    %v422 = vunpack.c.l.b16 %v402
    %v423 = vunpack.c.h.b16 %v402
    %v424 = vunpack.c.l.b16 %v403
    %v425 = vunpack.c.h.b16 %v403
    %v426 = vunpack.c.l.b16 %v404
    %v427 = vunpack.c.h.b16 %v404
    %v428 = vunpack.c.l.b16 %v405
    %v429 = vunpack.c.h.b16 %v405
    %v430 = vpack.c.b16 %v414, %v414
    %v431 = vpack.c.b16 %v415, %v415
    %v432 = vpack.c.b16 %v416, %v416
    %v433 = vpack.c.b16 %v417, %v417
    %v434 = vpack.c.b16 %v418, %v418
    %v435 = vpack.c.b16 %v419, %v419
    %v436 = vpack.c.b16 %v420, %v420
    %v437 = vpack.c.b16 %v421, %v421
    %v438 = vpack.c.b16 %v422, %v422
    %v439 = vpack.c.b16 %v423, %v423
    %v440 = vpack.c.b16 %v424, %v424
    %v441 = vpack.c.b16 %v425, %v425
    %v442 = vpack.c.b16 %v426, %v426
    %v443 = vpack.c.b16 %v427, %v427
    %v444 = vpack.c.b16 %v428, %v428
    %v445 = vpack.c.b16 %v429, %v429
    %462 = vst [vmem:[%s3] sm:$0xf] %v430
    %463 = vst [vmem:[%s3 + $0x4] sm:$0xf] %v431
    %464 = vst [vmem:[%s3 + $0x8] sm:$0xf] %v432
    %465 = vst [vmem:[%s3 + $0xc] sm:$0xf] %v433
    %466 = vst [vmem:[%s3 + $0x10] sm:$0xf] %v434
    %467 = vst [vmem:[%s3 + $0x14] sm:$0xf] %v435
    %468 = vst [vmem:[%s3 + $0x18] sm:$0xf] %v436
    %469 = vst [vmem:[%s3 + $0x1c] sm:$0xf] %v437
    %470 = vst [vmem:[%s3 + $0x20] sm:$0xf] %v438
    %471 = vst [vmem:[%s3 + $0x24] sm:$0xf] %v439
    %472 = vst [vmem:[%s3 + $0x28] sm:$0xf] %v440
    %473 = vst [vmem:[%s3 + $0x2c] sm:$0xf] %v441
    %474 = vst [vmem:[%s3 + $0x30] sm:$0xf] %v442
    %475 = vst [vmem:[%s3 + $0x34] sm:$0xf] %v443
    %476 = vst [vmem:[%s3 + $0x38] sm:$0xf] %v444
    %477 = vst [vmem:[%s3 + $0x3c] sm:$0xf] %v445
  $region21: #{_lambda_.5} parent=0 // pred_fallthru
    _
  // Predicated region
  $region22: #{_lambda_.5} parent=0 // pred_check
    _
  $region23: #{_lambda_.5} parent=0 // pred_check_branch
    %479 = sbr.rel (0) target = $region25
  $region24: #{_lambda_.5} parent=0 // pred_region
    _
  $region25: #{_lambda_.5} parent=0 // pred_fallthru
    _
  // Predicated region
  $region26: #{_lambda_.5} parent=0 // pred_check
    _
  $region27: #{_lambda_.5} parent=0 // pred_check_branch
    %481 = sbr.rel (0) target = $region29
  $region28: #{_lambda_.5} parent=0 // pred_region
    _
  $region29: #{_lambda_.5} parent=0 // pred_fallthru
    _

// kernel: _lambda_.7
$region0: #{_lambda_.7}
  #allocation0 [shape = 'u32[]', space=smem, size = 0x4, offset = 0x4, fixed_abs, tag = 'smem constant byte address 0x4 - core index']
  #allocation1 [shape = 'u32[144,128]{1,0:T(1,128)}', space=vmem, size = 0x12000, scoped, tag = 'internal scratch']
  #allocation2 [shape = 'f32[128,128]{1,0:T(8,128)}', space=vmem, size = 0x10000, scoped, tag = 'scratch operand']
  %s0 = inlined_call_operand.vmem [shape: bf16[128,256], index: 0, kind: input, shape index: {}]
  %s1 = inlined_call_operand.vmem [shape: bf16[256,128], index: 1, kind: input, shape index: {}]
  %s2 = inlined_call_operand.vmem [shape: f32[1,128], index: 2, kind: input, shape index: {}]
  %s3 = inlined_call_operand.vmem [shape: bf16[128,128], index: 3, kind: output, shape index: {}]
  %s4 = sld [smem:[#allocation0]]
  $region30: #{_lambda_.7} parent=0
    _
  %s6 = ssub.s32 1, %s4
  %s7 = scalar_select 0, %s6, %s4
  // Predicated region
  $region2: #{_lambda_.7} parent=0 // pred_check
    _
  $region3: #{_lambda_.7} parent=0 // pred_check_branch
    %9 = sbr.rel (0) target = $region5
  $region4: #{_lambda_.7} parent=0 // pred_region
    _
  $region5: #{_lambda_.7} parent=0 // pred_fallthru
    _
  // Predicated region
  $region6: #{_lambda_.7} parent=0 // pred_check
    _
  $region7: #{_lambda_.7} parent=0 // pred_check_branch
    %11 = sbr.rel (0) target = $region9
  $region8: #{_lambda_.7} parent=0 // pred_region
    _
  $region9: #{_lambda_.7} parent=0 // pred_fallthru
    _
  // Predicated region
  $region10: #{_lambda_.7} parent=0 // pred_check
    _
  $region11: #{_lambda_.7} parent=0 // pred_check_branch
    %13 = sbr.rel (0) target = $region13
  $region12: #{_lambda_.7} parent=0 // pred_region
    _
  $region13: #{_lambda_.7} parent=0 // pred_fallthru
    _
  %p15 = scmp.eq.s32.totalorder 0, 0
  // Predicated region
  $region14: #{_lambda_.7} parent=0 // pred_check
    %p16 = pneg %p15
  $region15: #{_lambda_.7} parent=0 // pred_check_branch
    %18 = sbr.rel (%p16) target = $region17
  $region16: #{_lambda_.7} parent=0 // pred_region
    %19 = vst [vmem:[#allocation2] sm:$0xff] 0.0
    %20 = vst [vmem:[#allocation2 + $0x8] sm:$0xff] 0.0
    %21 = vst [vmem:[#allocation2 + $0x10] sm:$0xff] 0.0
    %22 = vst [vmem:[#allocation2 + $0x18] sm:$0xff] 0.0
    %23 = vst [vmem:[#allocation2 + $0x20] sm:$0xff] 0.0
    %24 = vst [vmem:[#allocation2 + $0x28] sm:$0xff] 0.0
    %25 = vst [vmem:[#allocation2 + $0x30] sm:$0xff] 0.0
    %26 = vst [vmem:[#allocation2 + $0x38] sm:$0xff] 0.0
    %27 = vst [vmem:[#allocation2 + $0x40] sm:$0xff] 0.0
    %28 = vst [vmem:[#allocation2 + $0x48] sm:$0xff] 0.0
    %29 = vst [vmem:[#allocation2 + $0x50] sm:$0xff] 0.0
    %30 = vst [vmem:[#allocation2 + $0x58] sm:$0xff] 0.0
    %31 = vst [vmem:[#allocation2 + $0x60] sm:$0xff] 0.0
    %32 = vst [vmem:[#allocation2 + $0x68] sm:$0xff] 0.0
    %33 = vst [vmem:[#allocation2 + $0x70] sm:$0xff] 0.0
    %34 = vst [vmem:[#allocation2 + $0x78] sm:$0xff] 0.0
  $region17: #{_lambda_.7} parent=0 // pred_fallthru
    _
  %v35 = vld [vmem:[#allocation2] sm:$0xff]
  %v36 = vld [vmem:[#allocation2 + $0x8] sm:$0xff]
  %v37 = vld [vmem:[#allocation2 + $0x10] sm:$0xff]
  %v38 = vld [vmem:[#allocation2 + $0x18] sm:$0xff]
  %v39 = vld [vmem:[#allocation2 + $0x20] sm:$0xff]
  %v40 = vld [vmem:[#allocation2 + $0x28] sm:$0xff]
  %v41 = vld [vmem:[#allocation2 + $0x30] sm:$0xff]
  %v42 = vld [vmem:[#allocation2 + $0x38] sm:$0xff]
  %v43 = vld [vmem:[#allocation2 + $0x40] sm:$0xff]
  %v44 = vld [vmem:[#allocation2 + $0x48] sm:$0xff]
  %v45 = vld [vmem:[#allocation2 + $0x50] sm:$0xff]
  %v46 = vld [vmem:[#allocation2 + $0x58] sm:$0xff]
  %v47 = vld [vmem:[#allocation2 + $0x60] sm:$0xff]
  %v48 = vld [vmem:[#allocation2 + $0x68] sm:$0xff]
  %v49 = vld [vmem:[#allocation2 + $0x70] sm:$0xff]
  %v50 = vld [vmem:[#allocation2 + $0x78] sm:$0xff]
  %v51 = vld [vmem:[%s0] sm:$0xff]
  %v52 = vld [vmem:[%s0 + $0x8] sm:$0xff]
  %v53 = vld [vmem:[%s0 + $0x10] sm:$0xff]
  %v54 = vld [vmem:[%s0 + $0x18] sm:$0xff]
  %v55 = vld [vmem:[%s0 + $0x20] sm:$0xff]
  %v56 = vld [vmem:[%s0 + $0x28] sm:$0xff]
  %v57 = vld [vmem:[%s0 + $0x30] sm:$0xff]
  %v58 = vld [vmem:[%s0 + $0x38] sm:$0xff]
  %v59 = vld [vmem:[%s0 + $0x40] sm:$0xff]
  %v60 = vld [vmem:[%s0 + $0x48] sm:$0xff]
  %v61 = vld [vmem:[%s0 + $0x50] sm:$0xff]
  %v62 = vld [vmem:[%s0 + $0x58] sm:$0xff]
  %v63 = vld [vmem:[%s0 + $0x60] sm:$0xff]
  %v64 = vld [vmem:[%s0 + $0x68] sm:$0xff]
  %v65 = vld [vmem:[%s0 + $0x70] sm:$0xff]
  %v66 = vld [vmem:[%s0 + $0x78] sm:$0xff]
  %v67 = vld [vmem:[%s1] sm:$0xf]
  %v68 = vld [vmem:[%s1 + $0x4] sm:$0xf]
  %v69 = vld [vmem:[%s1 + $0x8] sm:$0xf]
  %v70 = vld [vmem:[%s1 + $0xc] sm:$0xf]
  %v71 = vld [vmem:[%s1 + $0x10] sm:$0xf]
  %v72 = vld [vmem:[%s1 + $0x14] sm:$0xf]
  %v73 = vld [vmem:[%s1 + $0x18] sm:$0xf]
  %v74 = vld [vmem:[%s1 + $0x1c] sm:$0xf]
  %v75 = vld [vmem:[%s1 + $0x20] sm:$0xf]
  %v76 = vld [vmem:[%s1 + $0x24] sm:$0xf]
  %v77 = vld [vmem:[%s1 + $0x28] sm:$0xf]
  %v78 = vld [vmem:[%s1 + $0x2c] sm:$0xf]
  %v79 = vld [vmem:[%s1 + $0x30] sm:$0xf]
  %v80 = vld [vmem:[%s1 + $0x34] sm:$0xf]
  %v81 = vld [vmem:[%s1 + $0x38] sm:$0xf]
  %v82 = vld [vmem:[%s1 + $0x3c] sm:$0xf]
  %v83 = vld [vmem:[%s1 + $0x40] sm:$0xf]
  %v84 = vld [vmem:[%s1 + $0x44] sm:$0xf]
  %v85 = vld [vmem:[%s1 + $0x48] sm:$0xf]
  %v86 = vld [vmem:[%s1 + $0x4c] sm:$0xf]
  %v87 = vld [vmem:[%s1 + $0x50] sm:$0xf]
  %v88 = vld [vmem:[%s1 + $0x54] sm:$0xf]
  %v89 = vld [vmem:[%s1 + $0x58] sm:$0xf]
  %v90 = vld [vmem:[%s1 + $0x5c] sm:$0xf]
  %v91 = vld [vmem:[%s1 + $0x60] sm:$0xf]
  %v92 = vld [vmem:[%s1 + $0x64] sm:$0xf]
  %v93 = vld [vmem:[%s1 + $0x68] sm:$0xf]
  %v94 = vld [vmem:[%s1 + $0x6c] sm:$0xf]
  %v95 = vld [vmem:[%s1 + $0x70] sm:$0xf]
  %v96 = vld [vmem:[%s1 + $0x74] sm:$0xf]
  %v97 = vld [vmem:[%s1 + $0x78] sm:$0xf]
  %v98 = vld [vmem:[%s1 + $0x7c] sm:$0xf]
  %v115 = vunpack.c.l.b16 %v51
  %v116 = vunpack.c.h.b16 %v51
  %v117 = vunpack.c.l.b16 %v52
  %v118 = vunpack.c.h.b16 %v52
  %v119 = vunpack.c.l.b16 %v53
  %v120 = vunpack.c.h.b16 %v53
  %v121 = vunpack.c.l.b16 %v54
  %v122 = vunpack.c.h.b16 %v54
  %v123 = vunpack.c.l.b16 %v55
  %v124 = vunpack.c.h.b16 %v55
  %v125 = vunpack.c.l.b16 %v56
  %v126 = vunpack.c.h.b16 %v56
  %v127 = vunpack.c.l.b16 %v57
  %v128 = vunpack.c.h.b16 %v57
  %v129 = vunpack.c.l.b16 %v58
  %v130 = vunpack.c.h.b16 %v58
  %v131 = vunpack.c.l.b16 %v59
  %v132 = vunpack.c.h.b16 %v59
  %v133 = vunpack.c.l.b16 %v60
  %v134 = vunpack.c.h.b16 %v60
  %v135 = vunpack.c.l.b16 %v61
  %v136 = vunpack.c.h.b16 %v61
  %v137 = vunpack.c.l.b16 %v62
  %v138 = vunpack.c.h.b16 %v62
  %v139 = vunpack.c.l.b16 %v63
  %v140 = vunpack.c.h.b16 %v63
  %v141 = vunpack.c.l.b16 %v64
  %v142 = vunpack.c.h.b16 %v64
  %v143 = vunpack.c.l.b16 %v65
  %v144 = vunpack.c.h.b16 %v65
  %v145 = vunpack.c.l.b16 %v66
  %v146 = vunpack.c.h.b16 %v66
  %v147 = vpack.c.b16 %v117, %v115
  %v148 = vpack.c.b16 %v118, %v116
  %v149 = vpack.c.b16 %v121, %v119
  %v150 = vpack.c.b16 %v122, %v120
  %v151 = vpack.c.b16 %v125, %v123
  %v152 = vpack.c.b16 %v126, %v124
  %v153 = vpack.c.b16 %v129, %v127
  %v154 = vpack.c.b16 %v130, %v128
  %v155 = vpack.c.b16 %v133, %v131
  %v156 = vpack.c.b16 %v134, %v132
  %v157 = vpack.c.b16 %v137, %v135
  %v158 = vpack.c.b16 %v138, %v136
  %v159 = vpack.c.b16 %v141, %v139
  %v160 = vpack.c.b16 %v142, %v140
  %v161 = vpack.c.b16 %v145, %v143
  %v162 = vpack.c.b16 %v146, %v144
  %v211 = vunpack.c.l.b16 %v67
  %v212 = vunpack.c.l.b16 %v68
  %v213 = vunpack.c.l.b16 %v69
  %v214 = vunpack.c.l.b16 %v70
  %v215 = vunpack.c.l.b16 %v71
  %v216 = vunpack.c.l.b16 %v72
  %v217 = vunpack.c.l.b16 %v73
  %v218 = vunpack.c.l.b16 %v74
  %v219 = vunpack.c.l.b16 %v75
  %v220 = vunpack.c.l.b16 %v76
  %v221 = vunpack.c.l.b16 %v77
  %v222 = vunpack.c.l.b16 %v78
  %v223 = vunpack.c.l.b16 %v79
  %v224 = vunpack.c.l.b16 %v80
  %v225 = vunpack.c.l.b16 %v81
  %v226 = vunpack.c.l.b16 %v82
  %v227 = vunpack.c.l.b16 %v83
  %v228 = vunpack.c.l.b16 %v84
  %v229 = vunpack.c.l.b16 %v85
  %v230 = vunpack.c.l.b16 %v86
  %v231 = vunpack.c.l.b16 %v87
  %v232 = vunpack.c.l.b16 %v88
  %v233 = vunpack.c.l.b16 %v89
  %v234 = vunpack.c.l.b16 %v90
  %v235 = vunpack.c.l.b16 %v91
  %v236 = vunpack.c.l.b16 %v92
  %v237 = vunpack.c.l.b16 %v93
  %v238 = vunpack.c.l.b16 %v94
  %v239 = vunpack.c.l.b16 %v95
  %v240 = vunpack.c.l.b16 %v96
  %v241 = vunpack.c.l.b16 %v97
  %v242 = vunpack.c.l.b16 %v98
  %v243 = vpack.c.b16 %v212, %v211
  %v244 = vpack.c.b16 %v214, %v213
  %v245 = vpack.c.b16 %v216, %v215
  %v246 = vpack.c.b16 %v218, %v217
  %v247 = vpack.c.b16 %v220, %v219
  %v248 = vpack.c.b16 %v222, %v221
  %v249 = vpack.c.b16 %v224, %v223
  %v250 = vpack.c.b16 %v226, %v225
  %v251 = vpack.c.b16 %v228, %v227
  %v252 = vpack.c.b16 %v230, %v229
  %v253 = vpack.c.b16 %v232, %v231
  %v254 = vpack.c.b16 %v234, %v233
  %v255 = vpack.c.b16 %v236, %v235
  %v256 = vpack.c.b16 %v238, %v237
  %v257 = vpack.c.b16 %v240, %v239
  %v258 = vpack.c.b16 %v242, %v241
  %275 = vmatprep.subr.bf16.mxu0 0
  %276 = vmatpush1.bf16.msra.mxu0 %v243
  %277 = vmatprep.subr.bf16.mxu0 0
  %278 = vmatpush1.bf16.msra.mxu0 %v244
  %279 = vmatprep.subr.bf16.mxu0 0
  %280 = vmatpush1.bf16.msra.mxu0 %v245
  %281 = vmatprep.subr.bf16.mxu0 0
  %282 = vmatpush1.bf16.msra.mxu0 %v246
  %283 = vmatprep.subr.bf16.mxu0 0
  %284 = vmatpush1.bf16.msra.mxu0 %v247
  %285 = vmatprep.subr.bf16.mxu0 0
  %286 = vmatpush1.bf16.msra.mxu0 %v248
  %287 = vmatprep.subr.bf16.mxu0 0
  %288 = vmatpush1.bf16.msra.mxu0 %v249
  %289 = vmatprep.subr.bf16.mxu0 0
  %290 = vmatpush1.bf16.msra.mxu0 %v250
  %291 = vmatprep.subr.bf16.mxu0 0
  %292 = vmatpush1.bf16.msra.mxu0 %v251
  %293 = vmatprep.subr.bf16.mxu0 0
  %294 = vmatpush1.bf16.msra.mxu0 %v252
  %295 = vmatprep.subr.bf16.mxu0 0
  %296 = vmatpush1.bf16.msra.mxu0 %v253
  %297 = vmatprep.subr.bf16.mxu0 0
  %298 = vmatpush1.bf16.msra.mxu0 %v254
  %299 = vmatprep.subr.bf16.mxu0 0
  %300 = vmatpush1.bf16.msra.mxu0 %v255
  %301 = vmatprep.subr.bf16.mxu0 0
  %302 = vmatpush1.bf16.msra.mxu0 %v256
  %303 = vmatprep.subr.bf16.mxu0 0
  %304 = vmatpush1.bf16.msra.mxu0 %v257
  %305 = vmatprep.subr.bf16.mxu0 0
  %306 = vmatpush1.bf16.msra.mxu0 %v258
  %307 = vmatprep.mubr.bf16.mxu0 %v148
  %308 = vmatmul.mubr.bf16.gmra.mrb[0].mxu0 %v147
  %v309 = vpop.f32.mrb[0].mxu0
  %v310 = vadd.f32 0.0, %v309
  %v311 = vpop.f32.mrb[0].mxu0
  %v312 = vpop.f32.mrb[0].mxu0
  %v313 = vadd.f32 0.0, %v312
  %v314 = vpop.f32.mrb[0].mxu0
  %315 = vmatprep.mubr.bf16.mxu0 %v150
  %316 = vmatmul.mubr.bf16.gmra.mrb[0].mxu0 %v149
  %v317 = vpop.f32.mrb[0].mxu0
  %v318 = vadd.f32 0.0, %v317
  %v319 = vpop.f32.mrb[0].mxu0
  %v320 = vpop.f32.mrb[0].mxu0
  %v321 = vadd.f32 0.0, %v320
  %v322 = vpop.f32.mrb[0].mxu0
  %323 = vmatprep.mubr.bf16.mxu0 %v152
  %324 = vmatmul.mubr.bf16.gmra.mrb[0].mxu0 %v151
  %v325 = vpop.f32.mrb[0].mxu0
  %v326 = vadd.f32 0.0, %v325
  %v327 = vpop.f32.mrb[0].mxu0
  %v328 = vpop.f32.mrb[0].mxu0
  %v329 = vadd.f32 0.0, %v328
  %v330 = vpop.f32.mrb[0].mxu0
  %331 = vmatprep.mubr.bf16.mxu0 %v154
  %332 = vmatmul.mubr.bf16.gmra.mrb[0].mxu0 %v153
  %v333 = vpop.f32.mrb[0].mxu0
  %v334 = vadd.f32 0.0, %v333
  %v335 = vpop.f32.mrb[0].mxu0
  %v336 = vpop.f32.mrb[0].mxu0
  %v337 = vadd.f32 0.0, %v336
  %v338 = vpop.f32.mrb[0].mxu0
  %339 = vmatprep.mubr.bf16.mxu0 %v156
  %340 = vmatmul.mubr.bf16.gmra.mrb[0].mxu0 %v155
  %v341 = vpop.f32.mrb[0].mxu0
  %v342 = vadd.f32 0.0, %v341
  %v343 = vpop.f32.mrb[0].mxu0
  %v344 = vpop.f32.mrb[0].mxu0
  %v345 = vadd.f32 0.0, %v344
  %v346 = vpop.f32.mrb[0].mxu0
  %347 = vmatprep.mubr.bf16.mxu0 %v158
  %348 = vmatmul.mubr.bf16.gmra.mrb[0].mxu0 %v157
  %v349 = vpop.f32.mrb[0].mxu0
  %v350 = vadd.f32 0.0, %v349
  %v351 = vpop.f32.mrb[0].mxu0
  %v352 = vpop.f32.mrb[0].mxu0
  %v353 = vadd.f32 0.0, %v352
  %v354 = vpop.f32.mrb[0].mxu0
  %355 = vmatprep.mubr.bf16.mxu0 %v160
  %356 = vmatmul.mubr.bf16.gmra.mrb[0].mxu0 %v159
  %v357 = vpop.f32.mrb[0].mxu0
  %v358 = vadd.f32 0.0, %v357
  %v359 = vpop.f32.mrb[0].mxu0
  %v360 = vpop.f32.mrb[0].mxu0
  %v361 = vadd.f32 0.0, %v360
  %v362 = vpop.f32.mrb[0].mxu0
  %363 = vmatprep.mubr.bf16.mxu0 %v162
  %364 = vmatmul.mubr.bf16.gmra.mrb[0].mxu0 %v161
  %v365 = vpop.f32.mrb[0].mxu0
  %v366 = vadd.f32 0.0, %v365
  %v367 = vpop.f32.mrb[0].mxu0
  %v368 = vpop.f32.mrb[0].mxu0
  %v369 = vadd.f32 0.0, %v368
  %v370 = vpop.f32.mrb[0].mxu0
  %371 = vdwg.mxu0
  %v372 = vadd.f32 %v35, %v310
  %v373 = vadd.f32 %v36, %v313
  %v374 = vadd.f32 %v37, %v318
  %v375 = vadd.f32 %v38, %v321
  %v376 = vadd.f32 %v39, %v326
  %v377 = vadd.f32 %v40, %v329
  %v378 = vadd.f32 %v41, %v334
  %v379 = vadd.f32 %v42, %v337
  %v380 = vadd.f32 %v43, %v342
  %v381 = vadd.f32 %v44, %v345
  %v382 = vadd.f32 %v45, %v350
  %v383 = vadd.f32 %v46, %v353
  %v384 = vadd.f32 %v47, %v358
  %v385 = vadd.f32 %v48, %v361
  %v386 = vadd.f32 %v49, %v366
  %v387 = vadd.f32 %v50, %v369
  %388 = vst [vmem:[#allocation2] sm:$0xff] %v372
  %389 = vst [vmem:[#allocation2 + $0x8] sm:$0xff] %v373
  %390 = vst [vmem:[#allocation2 + $0x10] sm:$0xff] %v374
  %391 = vst [vmem:[#allocation2 + $0x18] sm:$0xff] %v375
  %392 = vst [vmem:[#allocation2 + $0x20] sm:$0xff] %v376
  %393 = vst [vmem:[#allocation2 + $0x28] sm:$0xff] %v377
  %394 = vst [vmem:[#allocation2 + $0x30] sm:$0xff] %v378
  %395 = vst [vmem:[#allocation2 + $0x38] sm:$0xff] %v379
  %396 = vst [vmem:[#allocation2 + $0x40] sm:$0xff] %v380
  %397 = vst [vmem:[#allocation2 + $0x48] sm:$0xff] %v381
  %398 = vst [vmem:[#allocation2 + $0x50] sm:$0xff] %v382
  %399 = vst [vmem:[#allocation2 + $0x58] sm:$0xff] %v383
  %400 = vst [vmem:[#allocation2 + $0x60] sm:$0xff] %v384
  %401 = vst [vmem:[#allocation2 + $0x68] sm:$0xff] %v385
  %402 = vst [vmem:[#allocation2 + $0x70] sm:$0xff] %v386
  %403 = vst [vmem:[#allocation2 + $0x78] sm:$0xff] %v387
  // Predicated region
  $region18: #{_lambda_.7} parent=0 // pred_check
    %p404 = pneg %p15
  $region19: #{_lambda_.7} parent=0 // pred_check_branch
    %406 = sbr.rel (%p404) target = $region21
  $region20: #{_lambda_.7} parent=0 // pred_region
    %v407 = vld [vmem:[#allocation2] sm:$0xff]
    %v408 = vld [vmem:[#allocation2 + $0x8] sm:$0xff]
    %v409 = vld [vmem:[#allocation2 + $0x10] sm:$0xff]
    %v410 = vld [vmem:[#allocation2 + $0x18] sm:$0xff]
    %v411 = vld [vmem:[#allocation2 + $0x20] sm:$0xff]
    %v412 = vld [vmem:[#allocation2 + $0x28] sm:$0xff]
    %v413 = vld [vmem:[#allocation2 + $0x30] sm:$0xff]
    %v414 = vld [vmem:[#allocation2 + $0x38] sm:$0xff]
    %v415 = vld [vmem:[#allocation2 + $0x40] sm:$0xff]
    %v416 = vld [vmem:[#allocation2 + $0x48] sm:$0xff]
    %v417 = vld [vmem:[#allocation2 + $0x50] sm:$0xff]
    %v418 = vld [vmem:[#allocation2 + $0x58] sm:$0xff]
    %v419 = vld [vmem:[#allocation2 + $0x60] sm:$0xff]
    %v420 = vld [vmem:[#allocation2 + $0x68] sm:$0xff]
    %v421 = vld [vmem:[#allocation2 + $0x70] sm:$0xff]
    %v422 = vld [vmem:[#allocation2 + $0x78] sm:$0xff]
    %v423 = vld [vmem:[%s2] sm:$0x1]
    %v425 = vlaneseq
    %v426 = vshrl.u32 %v425, 7
    %v427 = vsub.s32 0, %v426
    %v428 = vrot.slane %v423, %v427
    %v430 = vadd.f32 %v407, %v428
    %v431 = vadd.f32 %v408, %v428
    %v432 = vadd.f32 %v409, %v428
    %v433 = vadd.f32 %v410, %v428
    %v434 = vadd.f32 %v411, %v428
    %v435 = vadd.f32 %v412, %v428
    %v436 = vadd.f32 %v413, %v428
    %v437 = vadd.f32 %v414, %v428
    %v438 = vadd.f32 %v415, %v428
    %v439 = vadd.f32 %v416, %v428
    %v440 = vadd.f32 %v417, %v428
    %v441 = vadd.f32 %v418, %v428
    %v442 = vadd.f32 %v419, %v428
    %v443 = vadd.f32 %v420, %v428
    %v444 = vadd.f32 %v421, %v428
    %v445 = vadd.f32 %v422, %v428
    %vm446 = vcmp.ge.f32.partialorder %v430, 0.0
    %vm447 = vcmp.ge.f32.partialorder %v431, 0.0
    %vm448 = vcmp.ge.f32.partialorder %v432, 0.0
    %vm449 = vcmp.ge.f32.partialorder %v433, 0.0
    %vm450 = vcmp.ge.f32.partialorder %v434, 0.0
    %vm451 = vcmp.ge.f32.partialorder %v435, 0.0
    %vm452 = vcmp.ge.f32.partialorder %v436, 0.0
    %vm453 = vcmp.ge.f32.partialorder %v437, 0.0
    %vm454 = vcmp.ge.f32.partialorder %v438, 0.0
    %vm455 = vcmp.ge.f32.partialorder %v439, 0.0
    %vm456 = vcmp.ge.f32.partialorder %v440, 0.0
    %vm457 = vcmp.ge.f32.partialorder %v441, 0.0
    %vm458 = vcmp.ge.f32.partialorder %v442, 0.0
    %vm459 = vcmp.ge.f32.partialorder %v443, 0.0
    %vm460 = vcmp.ge.f32.partialorder %v444, 0.0
    %vm461 = vcmp.ge.f32.partialorder %v445, 0.0
    %v462 = vmul.f32 %v430, 0.01
    %v463 = vmul.f32 %v431, 0.01
    %v464 = vmul.f32 %v432, 0.01
    %v465 = vmul.f32 %v433, 0.01
    %v466 = vmul.f32 %v434, 0.01
    %v467 = vmul.f32 %v435, 0.01
    %v468 = vmul.f32 %v436, 0.01
    %v469 = vmul.f32 %v437, 0.01
    %v470 = vmul.f32 %v438, 0.01
    %v471 = vmul.f32 %v439, 0.01
    %v472 = vmul.f32 %v440, 0.01
    %v473 = vmul.f32 %v441, 0.01
    %v474 = vmul.f32 %v442, 0.01
    %v475 = vmul.f32 %v443, 0.01
    %v476 = vmul.f32 %v444, 0.01
    %v477 = vmul.f32 %v445, 0.01
    %v478 = vsel %vm446, %v430, %v462
    %v479 = vsel %vm447, %v431, %v463
    %v480 = vsel %vm448, %v432, %v464
    %v481 = vsel %vm449, %v433, %v465
    %v482 = vsel %vm450, %v434, %v466
    %v483 = vsel %vm451, %v435, %v467
    %v484 = vsel %vm452, %v436, %v468
    %v485 = vsel %vm453, %v437, %v469
    %v486 = vsel %vm454, %v438, %v470
    %v487 = vsel %vm455, %v439, %v471
    %v488 = vsel %vm456, %v440, %v472
    %v489 = vsel %vm457, %v441, %v473
    %v490 = vsel %vm458, %v442, %v474
    %v491 = vsel %vm459, %v443, %v475
    %v492 = vsel %vm460, %v444, %v476
    %v493 = vsel %vm461, %v445, %v477
    %v494 = vpack.c.bf16 %v479, %v478
    %v495 = vpack.c.bf16 %v481, %v480
    %v496 = vpack.c.bf16 %v483, %v482
    %v497 = vpack.c.bf16 %v485, %v484
    %v498 = vpack.c.bf16 %v487, %v486
    %v499 = vpack.c.bf16 %v489, %v488
    %v500 = vpack.c.bf16 %v491, %v490
    %v501 = vpack.c.bf16 %v493, %v492
    %v510 = vunpack.c.l.b16 %v494
    %v511 = vunpack.c.h.b16 %v494
    %v512 = vunpack.c.l.b16 %v495
    %v513 = vunpack.c.h.b16 %v495
    %v514 = vunpack.c.l.b16 %v496
    %v515 = vunpack.c.h.b16 %v496
    %v516 = vunpack.c.l.b16 %v497
    %v517 = vunpack.c.h.b16 %v497
    %v518 = vunpack.c.l.b16 %v498
    %v519 = vunpack.c.h.b16 %v498
    %v520 = vunpack.c.l.b16 %v499
    %v521 = vunpack.c.h.b16 %v499
    %v522 = vunpack.c.l.b16 %v500
    %v523 = vunpack.c.h.b16 %v500
    %v524 = vunpack.c.l.b16 %v501
    %v525 = vunpack.c.h.b16 %v501
    %v526 = vpack.c.b16 %v510, %v510
    %v527 = vpack.c.b16 %v511, %v511
    %v528 = vpack.c.b16 %v512, %v512
    %v529 = vpack.c.b16 %v513, %v513
    %v530 = vpack.c.b16 %v514, %v514
    %v531 = vpack.c.b16 %v515, %v515
    %v532 = vpack.c.b16 %v516, %v516
    %v533 = vpack.c.b16 %v517, %v517
    %v534 = vpack.c.b16 %v518, %v518
    %v535 = vpack.c.b16 %v519, %v519
    %v536 = vpack.c.b16 %v520, %v520
    %v537 = vpack.c.b16 %v521, %v521
    %v538 = vpack.c.b16 %v522, %v522
    %v539 = vpack.c.b16 %v523, %v523
    %v540 = vpack.c.b16 %v524, %v524
    %v541 = vpack.c.b16 %v525, %v525
    %558 = vst [vmem:[%s3] sm:$0xf] %v526
    %559 = vst [vmem:[%s3 + $0x4] sm:$0xf] %v527
    %560 = vst [vmem:[%s3 + $0x8] sm:$0xf] %v528
    %561 = vst [vmem:[%s3 + $0xc] sm:$0xf] %v529
    %562 = vst [vmem:[%s3 + $0x10] sm:$0xf] %v530
    %563 = vst [vmem:[%s3 + $0x14] sm:$0xf] %v531
    %564 = vst [vmem:[%s3 + $0x18] sm:$0xf] %v532
    %565 = vst [vmem:[%s3 + $0x1c] sm:$0xf] %v533
    %566 = vst [vmem:[%s3 + $0x20] sm:$0xf] %v534
    %567 = vst [vmem:[%s3 + $0x24] sm:$0xf] %v535
    %568 = vst [vmem:[%s3 + $0x28] sm:$0xf] %v536
    %569 = vst [vmem:[%s3 + $0x2c] sm:$0xf] %v537
    %570 = vst [vmem:[%s3 + $0x30] sm:$0xf] %v538
    %571 = vst [vmem:[%s3 + $0x34] sm:$0xf] %v539
    %572 = vst [vmem:[%s3 + $0x38] sm:$0xf] %v540
    %573 = vst [vmem:[%s3 + $0x3c] sm:$0xf] %v541
  $region21: #{_lambda_.7} parent=0 // pred_fallthru
    _
  // Predicated region
  $region22: #{_lambda_.7} parent=0 // pred_check
    _
  $region23: #{_lambda_.7} parent=0 // pred_check_branch
    %575 = sbr.rel (0) target = $region25
  $region24: #{_lambda_.7} parent=0 // pred_region
    _
  $region25: #{_lambda_.7} parent=0 // pred_fallthru
    _
  // Predicated region
  $region26: #{_lambda_.7} parent=0 // pred_check
    _
  $region27: #{_lambda_.7} parent=0 // pred_check_branch
    %577 = sbr.rel (0) target = $region29
  $region28: #{_lambda_.7} parent=0 // pred_region
    _
  $region29: #{_lambda_.7} parent=0 // pred_fallthru
    _

// kernel: _lambda_.8
$region0: #{_lambda_.8}
  #allocation0 [shape = 'u32[]', space=smem, size = 0x4, offset = 0x4, fixed_abs, tag = 'smem constant byte address 0x4 - core index']
  #allocation1 [shape = 'u32[144,128]{1,0:T(1,128)}', space=vmem, size = 0x12000, scoped, tag = 'internal scratch']
  #allocation2 [shape = 'f32[128,128]{1,0:T(8,128)}', space=vmem, size = 0x10000, scoped, tag = 'scratch operand']
  %s0 = inlined_call_operand.vmem [shape: bf16[128,384], index: 0, kind: input, shape index: {}]
  %s1 = inlined_call_operand.vmem [shape: bf16[384,128], index: 1, kind: input, shape index: {}]
  %s2 = inlined_call_operand.vmem [shape: f32[128,128], index: 2, kind: output, shape index: {}]
  %s3 = sld [smem:[#allocation0]]
  $region26: #{_lambda_.8} parent=0
    _
  %s5 = ssub.s32 1, %s3
  %s6 = scalar_select 0, %s5, %s3
  // Predicated region
  $region2: #{_lambda_.8} parent=0 // pred_check
    _
  $region3: #{_lambda_.8} parent=0 // pred_check_branch
    %8 = sbr.rel (0) target = $region5
  $region4: #{_lambda_.8} parent=0 // pred_region
    _
  $region5: #{_lambda_.8} parent=0 // pred_fallthru
    _
  // Predicated region
  $region6: #{_lambda_.8} parent=0 // pred_check
    _
  $region7: #{_lambda_.8} parent=0 // pred_check_branch
    %10 = sbr.rel (0) target = $region9
  $region8: #{_lambda_.8} parent=0 // pred_region
    _
  $region9: #{_lambda_.8} parent=0 // pred_fallthru
    _
  %p12 = scmp.eq.s32.totalorder 0, 0
  // Predicated region
  $region10: #{_lambda_.8} parent=0 // pred_check
    %p13 = pneg %p12
  $region11: #{_lambda_.8} parent=0 // pred_check_branch
    %15 = sbr.rel (%p13) target = $region13
  $region12: #{_lambda_.8} parent=0 // pred_region
    %16 = vst [vmem:[#allocation2] sm:$0xff] 0.0
    %17 = vst [vmem:[#allocation2 + $0x8] sm:$0xff] 0.0
    %18 = vst [vmem:[#allocation2 + $0x10] sm:$0xff] 0.0
    %19 = vst [vmem:[#allocation2 + $0x18] sm:$0xff] 0.0
    %20 = vst [vmem:[#allocation2 + $0x20] sm:$0xff] 0.0
    %21 = vst [vmem:[#allocation2 + $0x28] sm:$0xff] 0.0
    %22 = vst [vmem:[#allocation2 + $0x30] sm:$0xff] 0.0
    %23 = vst [vmem:[#allocation2 + $0x38] sm:$0xff] 0.0
    %24 = vst [vmem:[#allocation2 + $0x40] sm:$0xff] 0.0
    %25 = vst [vmem:[#allocation2 + $0x48] sm:$0xff] 0.0
    %26 = vst [vmem:[#allocation2 + $0x50] sm:$0xff] 0.0
    %27 = vst [vmem:[#allocation2 + $0x58] sm:$0xff] 0.0
    %28 = vst [vmem:[#allocation2 + $0x60] sm:$0xff] 0.0
    %29 = vst [vmem:[#allocation2 + $0x68] sm:$0xff] 0.0
    %30 = vst [vmem:[#allocation2 + $0x70] sm:$0xff] 0.0
    %31 = vst [vmem:[#allocation2 + $0x78] sm:$0xff] 0.0
  $region13: #{_lambda_.8} parent=0 // pred_fallthru
    _
  %v32 = vld [vmem:[#allocation2] sm:$0xff]
  %v33 = vld [vmem:[#allocation2 + $0x8] sm:$0xff]
  %v34 = vld [vmem:[#allocation2 + $0x10] sm:$0xff]
  %v35 = vld [vmem:[#allocation2 + $0x18] sm:$0xff]
  %v36 = vld [vmem:[#allocation2 + $0x20] sm:$0xff]
  %v37 = vld [vmem:[#allocation2 + $0x28] sm:$0xff]
  %v38 = vld [vmem:[#allocation2 + $0x30] sm:$0xff]
  %v39 = vld [vmem:[#allocation2 + $0x38] sm:$0xff]
  %v40 = vld [vmem:[#allocation2 + $0x40] sm:$0xff]
  %v41 = vld [vmem:[#allocation2 + $0x48] sm:$0xff]
  %v42 = vld [vmem:[#allocation2 + $0x50] sm:$0xff]
  %v43 = vld [vmem:[#allocation2 + $0x58] sm:$0xff]
  %v44 = vld [vmem:[#allocation2 + $0x60] sm:$0xff]
  %v45 = vld [vmem:[#allocation2 + $0x68] sm:$0xff]
  %v46 = vld [vmem:[#allocation2 + $0x70] sm:$0xff]
  %v47 = vld [vmem:[#allocation2 + $0x78] sm:$0xff]
  %v48 = vld [vmem:[%s0] sm:$0xff]
  %v49 = vld [vmem:[%s0 + $0x8] sm:$0xf]
  %v50 = vld [vmem:[%s0 + $0xc] sm:$0xff]
  %v51 = vld [vmem:[%s0 + $0x14] sm:$0xf]
  %v52 = vld [vmem:[%s0 + $0x18] sm:$0xff]
  %v53 = vld [vmem:[%s0 + $0x20] sm:$0xf]
  %v54 = vld [vmem:[%s0 + $0x24] sm:$0xff]
  %v55 = vld [vmem:[%s0 + $0x2c] sm:$0xf]
  %v56 = vld [vmem:[%s0 + $0x30] sm:$0xff]
  %v57 = vld [vmem:[%s0 + $0x38] sm:$0xf]
  %v58 = vld [vmem:[%s0 + $0x3c] sm:$0xff]
  %v59 = vld [vmem:[%s0 + $0x44] sm:$0xf]
  %v60 = vld [vmem:[%s0 + $0x48] sm:$0xff]
  %v61 = vld [vmem:[%s0 + $0x50] sm:$0xf]
  %v62 = vld [vmem:[%s0 + $0x54] sm:$0xff]
  %v63 = vld [vmem:[%s0 + $0x5c] sm:$0xf]
  %v64 = vld [vmem:[%s0 + $0x60] sm:$0xff]
  %v65 = vld [vmem:[%s0 + $0x68] sm:$0xf]
  %v66 = vld [vmem:[%s0 + $0x6c] sm:$0xff]
  %v67 = vld [vmem:[%s0 + $0x74] sm:$0xf]
  %v68 = vld [vmem:[%s0 + $0x78] sm:$0xff]
  %v69 = vld [vmem:[%s0 + $0x80] sm:$0xf]
  %v70 = vld [vmem:[%s0 + $0x84] sm:$0xff]
  %v71 = vld [vmem:[%s0 + $0x8c] sm:$0xf]
  %v72 = vld [vmem:[%s0 + $0x90] sm:$0xff]
  %v73 = vld [vmem:[%s0 + $0x98] sm:$0xf]
  %v74 = vld [vmem:[%s0 + $0x9c] sm:$0xff]
  %v75 = vld [vmem:[%s0 + $0xa4] sm:$0xf]
  %v76 = vld [vmem:[%s0 + $0xa8] sm:$0xff]
  %v77 = vld [vmem:[%s0 + $0xb0] sm:$0xf]
  %v78 = vld [vmem:[%s0 + $0xb4] sm:$0xff]
  %v79 = vld [vmem:[%s0 + $0xbc] sm:$0xf]
  %v80 = vld [vmem:[%s1] sm:$0xf]
  %v81 = vld [vmem:[%s1 + $0x4] sm:$0xf]
  %v82 = vld [vmem:[%s1 + $0x8] sm:$0xf]
  %v83 = vld [vmem:[%s1 + $0xc] sm:$0xf]
  %v84 = vld [vmem:[%s1 + $0x10] sm:$0xf]
  %v85 = vld [vmem:[%s1 + $0x14] sm:$0xf]
  %v86 = vld [vmem:[%s1 + $0x18] sm:$0xf]
  %v87 = vld [vmem:[%s1 + $0x1c] sm:$0xf]
  %v88 = vld [vmem:[%s1 + $0x20] sm:$0xf]
  %v89 = vld [vmem:[%s1 + $0x24] sm:$0xf]
  %v90 = vld [vmem:[%s1 + $0x28] sm:$0xf]
  %v91 = vld [vmem:[%s1 + $0x2c] sm:$0xf]
  %v92 = vld [vmem:[%s1 + $0x30] sm:$0xf]
  %v93 = vld [vmem:[%s1 + $0x34] sm:$0xf]
  %v94 = vld [vmem:[%s1 + $0x38] sm:$0xf]
  %v95 = vld [vmem:[%s1 + $0x3c] sm:$0xf]
  %v96 = vld [vmem:[%s1 + $0x40] sm:$0xf]
  %v97 = vld [vmem:[%s1 + $0x44] sm:$0xf]
  %v98 = vld [vmem:[%s1 + $0x48] sm:$0xf]
  %v99 = vld [vmem:[%s1 + $0x4c] sm:$0xf]
  %v100 = vld [vmem:[%s1 + $0x50] sm:$0xf]
  %v101 = vld [vmem:[%s1 + $0x54] sm:$0xf]
  %v102 = vld [vmem:[%s1 + $0x58] sm:$0xf]
  %v103 = vld [vmem:[%s1 + $0x5c] sm:$0xf]
  %v104 = vld [vmem:[%s1 + $0x60] sm:$0xf]
  %v105 = vld [vmem:[%s1 + $0x64] sm:$0xf]
  %v106 = vld [vmem:[%s1 + $0x68] sm:$0xf]
  %v107 = vld [vmem:[%s1 + $0x6c] sm:$0xf]
  %v108 = vld [vmem:[%s1 + $0x70] sm:$0xf]
  %v109 = vld [vmem:[%s1 + $0x74] sm:$0xf]
  %v110 = vld [vmem:[%s1 + $0x78] sm:$0xf]
  %v111 = vld [vmem:[%s1 + $0x7c] sm:$0xf]
  %v112 = vld [vmem:[%s1 + $0x80] sm:$0xf]
  %v113 = vld [vmem:[%s1 + $0x84] sm:$0xf]
  %v114 = vld [vmem:[%s1 + $0x88] sm:$0xf]
  %v115 = vld [vmem:[%s1 + $0x8c] sm:$0xf]
  %v116 = vld [vmem:[%s1 + $0x90] sm:$0xf]
  %v117 = vld [vmem:[%s1 + $0x94] sm:$0xf]
  %v118 = vld [vmem:[%s1 + $0x98] sm:$0xf]
  %v119 = vld [vmem:[%s1 + $0x9c] sm:$0xf]
  %v120 = vld [vmem:[%s1 + $0xa0] sm:$0xf]
  %v121 = vld [vmem:[%s1 + $0xa4] sm:$0xf]
  %v122 = vld [vmem:[%s1 + $0xa8] sm:$0xf]
  %v123 = vld [vmem:[%s1 + $0xac] sm:$0xf]
  %v124 = vld [vmem:[%s1 + $0xb0] sm:$0xf]
  %v125 = vld [vmem:[%s1 + $0xb4] sm:$0xf]
  %v126 = vld [vmem:[%s1 + $0xb8] sm:$0xf]
  %v127 = vld [vmem:[%s1 + $0xbc] sm:$0xf]
  %v160 = vunpack.c.l.b16 %v48
  %v161 = vunpack.c.h.b16 %v48
  %v162 = vunpack.c.l.b16 %v49
  %v163 = vunpack.c.l.b16 %v50
  %v164 = vunpack.c.h.b16 %v50
  %v165 = vunpack.c.l.b16 %v51
  %v166 = vunpack.c.l.b16 %v52
  %v167 = vunpack.c.h.b16 %v52
  %v168 = vunpack.c.l.b16 %v53
  %v169 = vunpack.c.l.b16 %v54
  %v170 = vunpack.c.h.b16 %v54
  %v171 = vunpack.c.l.b16 %v55
  %v172 = vunpack.c.l.b16 %v56
  %v173 = vunpack.c.h.b16 %v56
  %v174 = vunpack.c.l.b16 %v57
  %v175 = vunpack.c.l.b16 %v58
  %v176 = vunpack.c.h.b16 %v58
  %v177 = vunpack.c.l.b16 %v59
  %v178 = vunpack.c.l.b16 %v60
  %v179 = vunpack.c.h.b16 %v60
  %v180 = vunpack.c.l.b16 %v61
  %v181 = vunpack.c.l.b16 %v62
  %v182 = vunpack.c.h.b16 %v62
  %v183 = vunpack.c.l.b16 %v63
  %v184 = vunpack.c.l.b16 %v64
  %v185 = vunpack.c.h.b16 %v64
  %v186 = vunpack.c.l.b16 %v65
  %v187 = vunpack.c.l.b16 %v66
  %v188 = vunpack.c.h.b16 %v66
  %v189 = vunpack.c.l.b16 %v67
  %v190 = vunpack.c.l.b16 %v68
  %v191 = vunpack.c.h.b16 %v68
  %v192 = vunpack.c.l.b16 %v69
  %v193 = vunpack.c.l.b16 %v70
  %v194 = vunpack.c.h.b16 %v70
  %v195 = vunpack.c.l.b16 %v71
  %v196 = vunpack.c.l.b16 %v72
  %v197 = vunpack.c.h.b16 %v72
  %v198 = vunpack.c.l.b16 %v73
  %v199 = vunpack.c.l.b16 %v74
  %v200 = vunpack.c.h.b16 %v74
  %v201 = vunpack.c.l.b16 %v75
  %v202 = vunpack.c.l.b16 %v76
  %v203 = vunpack.c.h.b16 %v76
  %v204 = vunpack.c.l.b16 %v77
  %v205 = vunpack.c.l.b16 %v78
  %v206 = vunpack.c.h.b16 %v78
  %v207 = vunpack.c.l.b16 %v79
  %v208 = vpack.c.b16 %v163, %v160
  %v209 = vpack.c.b16 %v164, %v161
  %v210 = vpack.c.b16 %v165, %v162
  %v211 = vpack.c.b16 %v169, %v166
  %v212 = vpack.c.b16 %v170, %v167
  %v213 = vpack.c.b16 %v171, %v168
  %v214 = vpack.c.b16 %v175, %v172
  %v215 = vpack.c.b16 %v176, %v173
  %v216 = vpack.c.b16 %v177, %v174
  %v217 = vpack.c.b16 %v181, %v178
  %v218 = vpack.c.b16 %v182, %v179
  %v219 = vpack.c.b16 %v183, %v180
  %v220 = vpack.c.b16 %v187, %v184
  %v221 = vpack.c.b16 %v188, %v185
  %v222 = vpack.c.b16 %v189, %v186
  %v223 = vpack.c.b16 %v193, %v190
  %v224 = vpack.c.b16 %v194, %v191
  %v225 = vpack.c.b16 %v195, %v192
  %v226 = vpack.c.b16 %v199, %v196
  %v227 = vpack.c.b16 %v200, %v197
  %v228 = vpack.c.b16 %v201, %v198
  %v229 = vpack.c.b16 %v205, %v202
  %v230 = vpack.c.b16 %v206, %v203
  %v231 = vpack.c.b16 %v207, %v204
  %v304 = vunpack.c.l.b16 %v80
  %v305 = vunpack.c.l.b16 %v81
  %v306 = vunpack.c.l.b16 %v82
  %v307 = vunpack.c.l.b16 %v83
  %v308 = vunpack.c.l.b16 %v84
  %v309 = vunpack.c.l.b16 %v85
  %v310 = vunpack.c.l.b16 %v86
  %v311 = vunpack.c.l.b16 %v87
  %v312 = vunpack.c.l.b16 %v88
  %v313 = vunpack.c.l.b16 %v89
  %v314 = vunpack.c.l.b16 %v90
  %v315 = vunpack.c.l.b16 %v91
  %v316 = vunpack.c.l.b16 %v92
  %v317 = vunpack.c.l.b16 %v93
  %v318 = vunpack.c.l.b16 %v94
  %v319 = vunpack.c.l.b16 %v95
  %v320 = vunpack.c.l.b16 %v96
  %v321 = vunpack.c.l.b16 %v97
  %v322 = vunpack.c.l.b16 %v98
  %v323 = vunpack.c.l.b16 %v99
  %v324 = vunpack.c.l.b16 %v100
  %v325 = vunpack.c.l.b16 %v101
  %v326 = vunpack.c.l.b16 %v102
  %v327 = vunpack.c.l.b16 %v103
  %v328 = vunpack.c.l.b16 %v104
  %v329 = vunpack.c.l.b16 %v105
  %v330 = vunpack.c.l.b16 %v106
  %v331 = vunpack.c.l.b16 %v107
  %v332 = vunpack.c.l.b16 %v108
  %v333 = vunpack.c.l.b16 %v109
  %v334 = vunpack.c.l.b16 %v110
  %v335 = vunpack.c.l.b16 %v111
  %v336 = vunpack.c.l.b16 %v112
  %v337 = vunpack.c.l.b16 %v113
  %v338 = vunpack.c.l.b16 %v114
  %v339 = vunpack.c.l.b16 %v115
  %v340 = vunpack.c.l.b16 %v116
  %v341 = vunpack.c.l.b16 %v117
  %v342 = vunpack.c.l.b16 %v118
  %v343 = vunpack.c.l.b16 %v119
  %v344 = vunpack.c.l.b16 %v120
  %v345 = vunpack.c.l.b16 %v121
  %v346 = vunpack.c.l.b16 %v122
  %v347 = vunpack.c.l.b16 %v123
  %v348 = vunpack.c.l.b16 %v124
  %v349 = vunpack.c.l.b16 %v125
  %v350 = vunpack.c.l.b16 %v126
  %v351 = vunpack.c.l.b16 %v127
  %v352 = vpack.c.b16 %v305, %v304
  %v353 = vpack.c.b16 %v307, %v306
  %v354 = vpack.c.b16 %v309, %v308
  %v355 = vpack.c.b16 %v311, %v310
  %v356 = vpack.c.b16 %v313, %v312
  %v357 = vpack.c.b16 %v315, %v314
  %v358 = vpack.c.b16 %v317, %v316
  %v359 = vpack.c.b16 %v319, %v318
  %v360 = vpack.c.b16 %v321, %v320
  %v361 = vpack.c.b16 %v323, %v322
  %v362 = vpack.c.b16 %v325, %v324
  %v363 = vpack.c.b16 %v327, %v326
  %v364 = vpack.c.b16 %v329, %v328
  %v365 = vpack.c.b16 %v331, %v330
  %v366 = vpack.c.b16 %v333, %v332
  %v367 = vpack.c.b16 %v335, %v334
  %v368 = vpack.c.b16 %v337, %v336
  %v369 = vpack.c.b16 %v339, %v338
  %v370 = vpack.c.b16 %v341, %v340
  %v371 = vpack.c.b16 %v343, %v342
  %v372 = vpack.c.b16 %v345, %v344
  %v373 = vpack.c.b16 %v347, %v346
  %v374 = vpack.c.b16 %v349, %v348
  %v375 = vpack.c.b16 %v351, %v350
  %400 = vmatprep.subr.bf16.mxu0 0
  %401 = vmatpush1.bf16.msra.mxu0 %v352
  %402 = vmatprep.subr.bf16.mxu0 0
  %403 = vmatpush1.bf16.msra.mxu0 %v353
  %404 = vmatprep.subr.bf16.mxu0 0
  %405 = vmatpush1.bf16.msra.mxu0 %v354
  %406 = vmatprep.subr.bf16.mxu0 0
  %407 = vmatpush1.bf16.msra.mxu0 %v355
  %408 = vmatprep.subr.bf16.mxu0 0
  %409 = vmatpush1.bf16.msra.mxu0 %v356
  %410 = vmatprep.subr.bf16.mxu0 0
  %411 = vmatpush1.bf16.msra.mxu0 %v357
  %412 = vmatprep.subr.bf16.mxu0 0
  %413 = vmatpush1.bf16.msra.mxu0 %v358
  %414 = vmatprep.subr.bf16.mxu0 0
  %415 = vmatpush1.bf16.msra.mxu0 %v359
  %416 = vmatprep.subr.bf16.mxu0 0
  %417 = vmatpush1.bf16.msra.mxu0 %v360
  %418 = vmatprep.subr.bf16.mxu0 0
  %419 = vmatpush1.bf16.msra.mxu0 %v361
  %420 = vmatprep.subr.bf16.mxu0 0
  %421 = vmatpush1.bf16.msra.mxu0 %v362
  %422 = vmatprep.subr.bf16.mxu0 0
  %423 = vmatpush1.bf16.msra.mxu0 %v363
  %424 = vmatprep.subr.bf16.mxu0 0
  %425 = vmatpush1.bf16.msra.mxu0 %v364
  %426 = vmatprep.subr.bf16.mxu0 0
  %427 = vmatpush1.bf16.msra.mxu0 %v365
  %428 = vmatprep.subr.bf16.mxu0 0
  %429 = vmatpush1.bf16.msra.mxu0 %v366
  %430 = vmatprep.subr.bf16.mxu0 0
  %431 = vmatpush1.bf16.msra.mxu0 %v367
  %432 = vmatprep.mubr.bf16.mxu0 %v209
  %433 = vmatmul.mubr.bf16.gmra.mrb[0].mxu0 %v208
  %v434 = vpop.f32.mrb[0].mxu0
  %v435 = vadd.f32 0.0, %v434
  %v436 = vpop.f32.mrb[0].mxu0
  %v437 = vpop.f32.mrb[0].mxu0
  %v438 = vadd.f32 0.0, %v437
  %v439 = vpop.f32.mrb[0].mxu0
  %440 = vmatprep.mubr.bf16.mxu0 %v212
  %441 = vmatmul.mubr.bf16.gmra.mrb[0].mxu0 %v211
  %v442 = vpop.f32.mrb[0].mxu0
  %v443 = vadd.f32 0.0, %v442
  %v444 = vpop.f32.mrb[0].mxu0
  %v445 = vpop.f32.mrb[0].mxu0
  %v446 = vadd.f32 0.0, %v445
  %v447 = vpop.f32.mrb[0].mxu0
  %448 = vmatprep.mubr.bf16.mxu0 %v215
  %449 = vmatmul.mubr.bf16.gmra.mrb[0].mxu0 %v214
  %v450 = vpop.f32.mrb[0].mxu0
  %v451 = vadd.f32 0.0, %v450
  %v452 = vpop.f32.mrb[0].mxu0
  %v453 = vpop.f32.mrb[0].mxu0
  %v454 = vadd.f32 0.0, %v453
  %v455 = vpop.f32.mrb[0].mxu0
  %456 = vmatprep.mubr.bf16.mxu0 %v218
  %457 = vmatmul.mubr.bf16.gmra.mrb[0].mxu0 %v217
  %v458 = vpop.f32.mrb[0].mxu0
  %v459 = vadd.f32 0.0, %v458
  %v460 = vpop.f32.mrb[0].mxu0
  %v461 = vpop.f32.mrb[0].mxu0
  %v462 = vadd.f32 0.0, %v461
  %v463 = vpop.f32.mrb[0].mxu0
  %464 = vmatprep.mubr.bf16.mxu0 %v221
  %465 = vmatmul.mubr.bf16.gmra.mrb[0].mxu0 %v220
  %v466 = vpop.f32.mrb[0].mxu0
  %v467 = vadd.f32 0.0, %v466
  %v468 = vpop.f32.mrb[0].mxu0
  %v469 = vpop.f32.mrb[0].mxu0
  %v470 = vadd.f32 0.0, %v469
  %v471 = vpop.f32.mrb[0].mxu0
  %472 = vmatprep.mubr.bf16.mxu0 %v224
  %473 = vmatmul.mubr.bf16.gmra.mrb[0].mxu0 %v223
  %v474 = vpop.f32.mrb[0].mxu0
  %v475 = vadd.f32 0.0, %v474
  %v476 = vpop.f32.mrb[0].mxu0
  %v477 = vpop.f32.mrb[0].mxu0
  %v478 = vadd.f32 0.0, %v477
  %v479 = vpop.f32.mrb[0].mxu0
  %480 = vmatprep.mubr.bf16.mxu0 %v227
  %481 = vmatmul.mubr.bf16.gmra.mrb[0].mxu0 %v226
  %v482 = vpop.f32.mrb[0].mxu0
  %v483 = vadd.f32 0.0, %v482
  %v484 = vpop.f32.mrb[0].mxu0
  %v485 = vpop.f32.mrb[0].mxu0
  %v486 = vadd.f32 0.0, %v485
  %v487 = vpop.f32.mrb[0].mxu0
  %488 = vmatprep.mubr.bf16.mxu0 %v230
  %489 = vmatmul.mubr.bf16.gmra.mrb[0].mxu0 %v229
  %v490 = vpop.f32.mrb[0].mxu0
  %v491 = vadd.f32 0.0, %v490
  %v492 = vpop.f32.mrb[0].mxu0
  %v493 = vpop.f32.mrb[0].mxu0
  %v494 = vadd.f32 0.0, %v493
  %v495 = vpop.f32.mrb[0].mxu0
  %496 = vdwg.mxu0
  %497 = vmatprep.subr.bf16.mxu0 0
  %498 = vmatpush1.bf16.msra.mxu0 %v368
  %499 = vmatprep.subr.bf16.mxu0 0
  %500 = vmatpush1.bf16.msra.mxu0 %v369
  %501 = vmatprep.subr.bf16.mxu0 0
  %502 = vmatpush1.bf16.msra.mxu0 %v370
  %503 = vmatprep.subr.bf16.mxu0 0
  %504 = vmatpush1.bf16.msra.mxu0 %v371
  %505 = vmatprep.subr.bf16.mxu0 0
  %506 = vmatpush1.bf16.msra.mxu0 %v372
  %507 = vmatprep.subr.bf16.mxu0 0
  %508 = vmatpush1.bf16.msra.mxu0 %v373
  %509 = vmatprep.subr.bf16.mxu0 0
  %510 = vmatpush1.bf16.msra.mxu0 %v374
  %511 = vmatprep.subr.bf16.mxu0 0
  %512 = vmatpush1.bf16.msra.mxu0 %v375
  %513 = vmatprep.subr.bf16.mxu0 0
  %514 = vmatpush1.bf16.msra.mxu0 0
  %515 = vmatprep.subr.bf16.mxu0 0
  %516 = vmatpush1.bf16.msra.mxu0 0
  %517 = vmatprep.subr.bf16.mxu0 0
  %518 = vmatpush1.bf16.msra.mxu0 0
  %519 = vmatprep.subr.bf16.mxu0 0
  %520 = vmatpush1.bf16.msra.mxu0 0
  %521 = vmatprep.subr.bf16.mxu0 0
  %522 = vmatpush1.bf16.msra.mxu0 0
  %523 = vmatprep.subr.bf16.mxu0 0
  %524 = vmatpush1.bf16.msra.mxu0 0
  %525 = vmatprep.subr.bf16.mxu0 0
  %526 = vmatpush1.bf16.msra.mxu0 0
  %527 = vmatprep.subr.bf16.mxu0 0
  %528 = vmatpush1.bf16.msra.mxu0 0
  %529 = vmatprep.mubr.bf16.mxu0 0
  %530 = vmatmul.mubr.bf16.gmra.mrb[0].mxu0 %v210
  %v531 = vpop.f32.mrb[0].mxu0
  %v532 = vadd.f32 %v435, %v531
  %v533 = vpop.f32.mrb[0].mxu0
  %v534 = vpop.f32.mrb[0].mxu0
  %v535 = vadd.f32 %v438, %v534
  %v536 = vpop.f32.mrb[0].mxu0
  %537 = vmatprep.mubr.bf16.mxu0 0
  %538 = vmatmul.mubr.bf16.gmra.mrb[0].mxu0 %v213
  %v539 = vpop.f32.mrb[0].mxu0
  %v540 = vadd.f32 %v443, %v539
  %v541 = vpop.f32.mrb[0].mxu0
  %v542 = vpop.f32.mrb[0].mxu0
  %v543 = vadd.f32 %v446, %v542
  %v544 = vpop.f32.mrb[0].mxu0
  %545 = vmatprep.mubr.bf16.mxu0 0
  %546 = vmatmul.mubr.bf16.gmra.mrb[0].mxu0 %v216
  %v547 = vpop.f32.mrb[0].mxu0
  %v548 = vadd.f32 %v451, %v547
  %v549 = vpop.f32.mrb[0].mxu0
  %v550 = vpop.f32.mrb[0].mxu0
  %v551 = vadd.f32 %v454, %v550
  %v552 = vpop.f32.mrb[0].mxu0
  %553 = vmatprep.mubr.bf16.mxu0 0
  %554 = vmatmul.mubr.bf16.gmra.mrb[0].mxu0 %v219
  %v555 = vpop.f32.mrb[0].mxu0
  %v556 = vadd.f32 %v459, %v555
  %v557 = vpop.f32.mrb[0].mxu0
  %v558 = vpop.f32.mrb[0].mxu0
  %v559 = vadd.f32 %v462, %v558
  %v560 = vpop.f32.mrb[0].mxu0
  %561 = vmatprep.mubr.bf16.mxu0 0
  %562 = vmatmul.mubr.bf16.gmra.mrb[0].mxu0 %v222
  %v563 = vpop.f32.mrb[0].mxu0
  %v564 = vadd.f32 %v467, %v563
  %v565 = vpop.f32.mrb[0].mxu0
  %v566 = vpop.f32.mrb[0].mxu0
  %v567 = vadd.f32 %v470, %v566
  %v568 = vpop.f32.mrb[0].mxu0
  %569 = vmatprep.mubr.bf16.mxu0 0
  %570 = vmatmul.mubr.bf16.gmra.mrb[0].mxu0 %v225
  %v571 = vpop.f32.mrb[0].mxu0
  %v572 = vadd.f32 %v475, %v571
  %v573 = vpop.f32.mrb[0].mxu0
  %v574 = vpop.f32.mrb[0].mxu0
  %v575 = vadd.f32 %v478, %v574
  %v576 = vpop.f32.mrb[0].mxu0
  %577 = vmatprep.mubr.bf16.mxu0 0
  %578 = vmatmul.mubr.bf16.gmra.mrb[0].mxu0 %v228
  %v579 = vpop.f32.mrb[0].mxu0
  %v580 = vadd.f32 %v483, %v579
  %v581 = vpop.f32.mrb[0].mxu0
  %v582 = vpop.f32.mrb[0].mxu0
  %v583 = vadd.f32 %v486, %v582
  %v584 = vpop.f32.mrb[0].mxu0
  %585 = vmatprep.mubr.bf16.mxu0 0
  %586 = vmatmul.mubr.bf16.gmra.mrb[0].mxu0 %v231
  %v587 = vpop.f32.mrb[0].mxu0
  %v588 = vadd.f32 %v491, %v587
  %v589 = vpop.f32.mrb[0].mxu0
  %v590 = vpop.f32.mrb[0].mxu0
  %v591 = vadd.f32 %v494, %v590
  %v592 = vpop.f32.mrb[0].mxu0
  %593 = vdwg.mxu0
  %v594 = vadd.f32 %v32, %v532
  %v595 = vadd.f32 %v33, %v535
  %v596 = vadd.f32 %v34, %v540
  %v597 = vadd.f32 %v35, %v543
  %v598 = vadd.f32 %v36, %v548
  %v599 = vadd.f32 %v37, %v551
  %v600 = vadd.f32 %v38, %v556
  %v601 = vadd.f32 %v39, %v559
  %v602 = vadd.f32 %v40, %v564
  %v603 = vadd.f32 %v41, %v567
  %v604 = vadd.f32 %v42, %v572
  %v605 = vadd.f32 %v43, %v575
  %v606 = vadd.f32 %v44, %v580
  %v607 = vadd.f32 %v45, %v583
  %v608 = vadd.f32 %v46, %v588
  %v609 = vadd.f32 %v47, %v591
  %610 = vst [vmem:[#allocation2] sm:$0xff] %v594
  %611 = vst [vmem:[#allocation2 + $0x8] sm:$0xff] %v595
  %612 = vst [vmem:[#allocation2 + $0x10] sm:$0xff] %v596
  %613 = vst [vmem:[#allocation2 + $0x18] sm:$0xff] %v597
  %614 = vst [vmem:[#allocation2 + $0x20] sm:$0xff] %v598
  %615 = vst [vmem:[#allocation2 + $0x28] sm:$0xff] %v599
  %616 = vst [vmem:[#allocation2 + $0x30] sm:$0xff] %v600
  %617 = vst [vmem:[#allocation2 + $0x38] sm:$0xff] %v601
  %618 = vst [vmem:[#allocation2 + $0x40] sm:$0xff] %v602
  %619 = vst [vmem:[#allocation2 + $0x48] sm:$0xff] %v603
  %620 = vst [vmem:[#allocation2 + $0x50] sm:$0xff] %v604
  %621 = vst [vmem:[#allocation2 + $0x58] sm:$0xff] %v605
  %622 = vst [vmem:[#allocation2 + $0x60] sm:$0xff] %v606
  %623 = vst [vmem:[#allocation2 + $0x68] sm:$0xff] %v607
  %624 = vst [vmem:[#allocation2 + $0x70] sm:$0xff] %v608
  %625 = vst [vmem:[#allocation2 + $0x78] sm:$0xff] %v609
  // Predicated region
  $region14: #{_lambda_.8} parent=0 // pred_check
    %p626 = pneg %p12
  $region15: #{_lambda_.8} parent=0 // pred_check_branch
    %628 = sbr.rel (%p626) target = $region17
  $region16: #{_lambda_.8} parent=0 // pred_region
    %v629 = vld [vmem:[#allocation2] sm:$0xff]
    %v630 = vld [vmem:[#allocation2 + $0x8] sm:$0xff]
    %v631 = vld [vmem:[#allocation2 + $0x10] sm:$0xff]
    %v632 = vld [vmem:[#allocation2 + $0x18] sm:$0xff]
    %v633 = vld [vmem:[#allocation2 + $0x20] sm:$0xff]
    %v634 = vld [vmem:[#allocation2 + $0x28] sm:$0xff]
    %v635 = vld [vmem:[#allocation2 + $0x30] sm:$0xff]
    %v636 = vld [vmem:[#allocation2 + $0x38] sm:$0xff]
    %v637 = vld [vmem:[#allocation2 + $0x40] sm:$0xff]
    %v638 = vld [vmem:[#allocation2 + $0x48] sm:$0xff]
    %v639 = vld [vmem:[#allocation2 + $0x50] sm:$0xff]
    %v640 = vld [vmem:[#allocation2 + $0x58] sm:$0xff]
    %v641 = vld [vmem:[#allocation2 + $0x60] sm:$0xff]
    %v642 = vld [vmem:[#allocation2 + $0x68] sm:$0xff]
    %v643 = vld [vmem:[#allocation2 + $0x70] sm:$0xff]
    %v644 = vld [vmem:[#allocation2 + $0x78] sm:$0xff]
    %645 = vst [vmem:[%s2] sm:$0xff] %v629
    %646 = vst [vmem:[%s2 + $0x8] sm:$0xff] %v630
    %647 = vst [vmem:[%s2 + $0x10] sm:$0xff] %v631
    %648 = vst [vmem:[%s2 + $0x18] sm:$0xff] %v632
    %649 = vst [vmem:[%s2 + $0x20] sm:$0xff] %v633
    %650 = vst [vmem:[%s2 + $0x28] sm:$0xff] %v634
    %651 = vst [vmem:[%s2 + $0x30] sm:$0xff] %v635
    %652 = vst [vmem:[%s2 + $0x38] sm:$0xff] %v636
    %653 = vst [vmem:[%s2 + $0x40] sm:$0xff] %v637
    %654 = vst [vmem:[%s2 + $0x48] sm:$0xff] %v638
    %655 = vst [vmem:[%s2 + $0x50] sm:$0xff] %v639
    %656 = vst [vmem:[%s2 + $0x58] sm:$0xff] %v640
    %657 = vst [vmem:[%s2 + $0x60] sm:$0xff] %v641
    %658 = vst [vmem:[%s2 + $0x68] sm:$0xff] %v642
    %659 = vst [vmem:[%s2 + $0x70] sm:$0xff] %v643
    %660 = vst [vmem:[%s2 + $0x78] sm:$0xff] %v644
  $region17: #{_lambda_.8} parent=0 // pred_fallthru
    _
  // Predicated region
  $region18: #{_lambda_.8} parent=0 // pred_check
    _
  $region19: #{_lambda_.8} parent=0 // pred_check_branch
    %662 = sbr.rel (0) target = $region21
  $region20: #{_lambda_.8} parent=0 // pred_region
    _
  $region21: #{_lambda_.8} parent=0 // pred_fallthru
    _
  // Predicated region
  $region22: #{_lambda_.8} parent=0 // pred_check
    _
  $region23: #{_lambda_.8} parent=0 // pred_check_branch
    %664 = sbr.rel (0) target = $region25
  $region24: #{_lambda_.8} parent=0 // pred_region
    _
  $region25: #{_lambda_.8} parent=0 // pred_fallthru
    _

// kernel: _lambda_.9
$region0: #{_lambda_.9}
  #allocation0 [shape = 'u32[]', space=smem, size = 0x4, offset = 0x4, fixed_abs, tag = 'smem constant byte address 0x4 - core index']
  #allocation1 [shape = 'u32[144,128]{1,0:T(1,128)}', space=vmem, size = 0x12000, scoped, tag = 'internal scratch']
  #allocation2 [shape = 'f32[128,128]{1,0:T(8,128)}', space=vmem, size = 0x10000, scoped, tag = 'scratch operand']
  %s0 = inlined_call_operand.vmem [shape: bf16[128,128], index: 0, kind: input, shape index: {}]
  %s1 = inlined_call_operand.vmem [shape: bf16[128,128], index: 1, kind: input, shape index: {}]
  %s2 = inlined_call_operand.vmem [shape: f32[128,128], index: 2, kind: output, shape index: {}]
  %s3 = sld [smem:[#allocation0]]
  $region26: #{_lambda_.9} parent=0
    _
  %s5 = ssub.s32 1, %s3
  %s6 = scalar_select 0, %s5, %s3
  // Predicated region
  $region2: #{_lambda_.9} parent=0 // pred_check
    _
  $region3: #{_lambda_.9} parent=0 // pred_check_branch
    %8 = sbr.rel (0) target = $region5
  $region4: #{_lambda_.9} parent=0 // pred_region
    _
  $region5: #{_lambda_.9} parent=0 // pred_fallthru
    _
  // Predicated region
  $region6: #{_lambda_.9} parent=0 // pred_check
    _
  $region7: #{_lambda_.9} parent=0 // pred_check_branch
    %10 = sbr.rel (0) target = $region9
  $region8: #{_lambda_.9} parent=0 // pred_region
    _
  $region9: #{_lambda_.9} parent=0 // pred_fallthru
    _
  %p12 = scmp.eq.s32.totalorder 0, 0
  // Predicated region
  $region10: #{_lambda_.9} parent=0 // pred_check
    %p13 = pneg %p12
  $region11: #{_lambda_.9} parent=0 // pred_check_branch
    %15 = sbr.rel (%p13) target = $region13
  $region12: #{_lambda_.9} parent=0 // pred_region
    %16 = vst [vmem:[#allocation2] sm:$0xff] 0.0
    %17 = vst [vmem:[#allocation2 + $0x8] sm:$0xff] 0.0
    %18 = vst [vmem:[#allocation2 + $0x10] sm:$0xff] 0.0
    %19 = vst [vmem:[#allocation2 + $0x18] sm:$0xff] 0.0
    %20 = vst [vmem:[#allocation2 + $0x20] sm:$0xff] 0.0
    %21 = vst [vmem:[#allocation2 + $0x28] sm:$0xff] 0.0
    %22 = vst [vmem:[#allocation2 + $0x30] sm:$0xff] 0.0
    %23 = vst [vmem:[#allocation2 + $0x38] sm:$0xff] 0.0
    %24 = vst [vmem:[#allocation2 + $0x40] sm:$0xff] 0.0
    %25 = vst [vmem:[#allocation2 + $0x48] sm:$0xff] 0.0
    %26 = vst [vmem:[#allocation2 + $0x50] sm:$0xff] 0.0
    %27 = vst [vmem:[#allocation2 + $0x58] sm:$0xff] 0.0
    %28 = vst [vmem:[#allocation2 + $0x60] sm:$0xff] 0.0
    %29 = vst [vmem:[#allocation2 + $0x68] sm:$0xff] 0.0
    %30 = vst [vmem:[#allocation2 + $0x70] sm:$0xff] 0.0
    %31 = vst [vmem:[#allocation2 + $0x78] sm:$0xff] 0.0
  $region13: #{_lambda_.9} parent=0 // pred_fallthru
    _
  %v32 = vld [vmem:[#allocation2] sm:$0xff]
  %v33 = vld [vmem:[#allocation2 + $0x8] sm:$0xff]
  %v34 = vld [vmem:[#allocation2 + $0x10] sm:$0xff]
  %v35 = vld [vmem:[#allocation2 + $0x18] sm:$0xff]
  %v36 = vld [vmem:[#allocation2 + $0x20] sm:$0xff]
  %v37 = vld [vmem:[#allocation2 + $0x28] sm:$0xff]
  %v38 = vld [vmem:[#allocation2 + $0x30] sm:$0xff]
  %v39 = vld [vmem:[#allocation2 + $0x38] sm:$0xff]
  %v40 = vld [vmem:[#allocation2 + $0x40] sm:$0xff]
  %v41 = vld [vmem:[#allocation2 + $0x48] sm:$0xff]
  %v42 = vld [vmem:[#allocation2 + $0x50] sm:$0xff]
  %v43 = vld [vmem:[#allocation2 + $0x58] sm:$0xff]
  %v44 = vld [vmem:[#allocation2 + $0x60] sm:$0xff]
  %v45 = vld [vmem:[#allocation2 + $0x68] sm:$0xff]
  %v46 = vld [vmem:[#allocation2 + $0x70] sm:$0xff]
  %v47 = vld [vmem:[#allocation2 + $0x78] sm:$0xff]
  %v48 = vld [vmem:[%s0] sm:$0xf]
  %v49 = vld [vmem:[%s0 + $0x4] sm:$0xf]
  %v50 = vld [vmem:[%s0 + $0x8] sm:$0xf]
  %v51 = vld [vmem:[%s0 + $0xc] sm:$0xf]
  %v52 = vld [vmem:[%s0 + $0x10] sm:$0xf]
  %v53 = vld [vmem:[%s0 + $0x14] sm:$0xf]
  %v54 = vld [vmem:[%s0 + $0x18] sm:$0xf]
  %v55 = vld [vmem:[%s0 + $0x1c] sm:$0xf]
  %v56 = vld [vmem:[%s0 + $0x20] sm:$0xf]
  %v57 = vld [vmem:[%s0 + $0x24] sm:$0xf]
  %v58 = vld [vmem:[%s0 + $0x28] sm:$0xf]
  %v59 = vld [vmem:[%s0 + $0x2c] sm:$0xf]
  %v60 = vld [vmem:[%s0 + $0x30] sm:$0xf]
  %v61 = vld [vmem:[%s0 + $0x34] sm:$0xf]
  %v62 = vld [vmem:[%s0 + $0x38] sm:$0xf]
  %v63 = vld [vmem:[%s0 + $0x3c] sm:$0xf]
  %v64 = vld [vmem:[%s1] sm:$0xf]
  %v65 = vld [vmem:[%s1 + $0x4] sm:$0xf]
  %v66 = vld [vmem:[%s1 + $0x8] sm:$0xf]
  %v67 = vld [vmem:[%s1 + $0xc] sm:$0xf]
  %v68 = vld [vmem:[%s1 + $0x10] sm:$0xf]
  %v69 = vld [vmem:[%s1 + $0x14] sm:$0xf]
  %v70 = vld [vmem:[%s1 + $0x18] sm:$0xf]
  %v71 = vld [vmem:[%s1 + $0x1c] sm:$0xf]
  %v72 = vld [vmem:[%s1 + $0x20] sm:$0xf]
  %v73 = vld [vmem:[%s1 + $0x24] sm:$0xf]
  %v74 = vld [vmem:[%s1 + $0x28] sm:$0xf]
  %v75 = vld [vmem:[%s1 + $0x2c] sm:$0xf]
  %v76 = vld [vmem:[%s1 + $0x30] sm:$0xf]
  %v77 = vld [vmem:[%s1 + $0x34] sm:$0xf]
  %v78 = vld [vmem:[%s1 + $0x38] sm:$0xf]
  %v79 = vld [vmem:[%s1 + $0x3c] sm:$0xf]
  %v96 = vunpack.c.l.b16 %v48
  %v97 = vunpack.c.l.b16 %v49
  %v98 = vunpack.c.l.b16 %v50
  %v99 = vunpack.c.l.b16 %v51
  %v100 = vunpack.c.l.b16 %v52
  %v101 = vunpack.c.l.b16 %v53
  %v102 = vunpack.c.l.b16 %v54
  %v103 = vunpack.c.l.b16 %v55
  %v104 = vunpack.c.l.b16 %v56
  %v105 = vunpack.c.l.b16 %v57
  %v106 = vunpack.c.l.b16 %v58
  %v107 = vunpack.c.l.b16 %v59
  %v108 = vunpack.c.l.b16 %v60
  %v109 = vunpack.c.l.b16 %v61
  %v110 = vunpack.c.l.b16 %v62
  %v111 = vunpack.c.l.b16 %v63
  %v112 = vpack.c.b16 %v97, %v96
  %v113 = vpack.c.b16 %v99, %v98
  %v114 = vpack.c.b16 %v101, %v100
  %v115 = vpack.c.b16 %v103, %v102
  %v116 = vpack.c.b16 %v105, %v104
  %v117 = vpack.c.b16 %v107, %v106
  %v118 = vpack.c.b16 %v109, %v108
  %v119 = vpack.c.b16 %v111, %v110
  %v144 = vunpack.c.l.b16 %v64
  %v145 = vunpack.c.l.b16 %v65
  %v146 = vunpack.c.l.b16 %v66
  %v147 = vunpack.c.l.b16 %v67
  %v148 = vunpack.c.l.b16 %v68
  %v149 = vunpack.c.l.b16 %v69
  %v150 = vunpack.c.l.b16 %v70
  %v151 = vunpack.c.l.b16 %v71
  %v152 = vunpack.c.l.b16 %v72
  %v153 = vunpack.c.l.b16 %v73
  %v154 = vunpack.c.l.b16 %v74
  %v155 = vunpack.c.l.b16 %v75
  %v156 = vunpack.c.l.b16 %v76
  %v157 = vunpack.c.l.b16 %v77
  %v158 = vunpack.c.l.b16 %v78
  %v159 = vunpack.c.l.b16 %v79
  %v160 = vpack.c.b16 %v145, %v144
  %v161 = vpack.c.b16 %v147, %v146
  %v162 = vpack.c.b16 %v149, %v148
  %v163 = vpack.c.b16 %v151, %v150
  %v164 = vpack.c.b16 %v153, %v152
  %v165 = vpack.c.b16 %v155, %v154
  %v166 = vpack.c.b16 %v157, %v156
  %v167 = vpack.c.b16 %v159, %v158
  %176 = vmatprep.subr.bf16.mxu0 0
  %177 = vmatpush1.bf16.msra.mxu0 %v160
  %178 = vmatprep.subr.bf16.mxu0 0
  %179 = vmatpush1.bf16.msra.mxu0 %v161
  %180 = vmatprep.subr.bf16.mxu0 0
  %181 = vmatpush1.bf16.msra.mxu0 %v162
  %182 = vmatprep.subr.bf16.mxu0 0
  %183 = vmatpush1.bf16.msra.mxu0 %v163
  %184 = vmatprep.subr.bf16.mxu0 0
  %185 = vmatpush1.bf16.msra.mxu0 %v164
  %186 = vmatprep.subr.bf16.mxu0 0
  %187 = vmatpush1.bf16.msra.mxu0 %v165
  %188 = vmatprep.subr.bf16.mxu0 0
  %189 = vmatpush1.bf16.msra.mxu0 %v166
  %190 = vmatprep.subr.bf16.mxu0 0
  %191 = vmatpush1.bf16.msra.mxu0 %v167
  %192 = vmatprep.subr.bf16.mxu0 0
  %193 = vmatpush1.bf16.msra.mxu0 0
  %194 = vmatprep.subr.bf16.mxu0 0
  %195 = vmatpush1.bf16.msra.mxu0 0
  %196 = vmatprep.subr.bf16.mxu0 0
  %197 = vmatpush1.bf16.msra.mxu0 0
  %198 = vmatprep.subr.bf16.mxu0 0
  %199 = vmatpush1.bf16.msra.mxu0 0
  %200 = vmatprep.subr.bf16.mxu0 0
  %201 = vmatpush1.bf16.msra.mxu0 0
  %202 = vmatprep.subr.bf16.mxu0 0
  %203 = vmatpush1.bf16.msra.mxu0 0
  %204 = vmatprep.subr.bf16.mxu0 0
  %205 = vmatpush1.bf16.msra.mxu0 0
  %206 = vmatprep.subr.bf16.mxu0 0
  %207 = vmatpush1.bf16.msra.mxu0 0
  %208 = vmatprep.mubr.bf16.mxu0 0
  %209 = vmatmul.mubr.bf16.gmra.mrb[0].mxu0 %v112
  %v210 = vpop.f32.mrb[0].mxu0
  %v211 = vadd.f32 0.0, %v210
  %v212 = vpop.f32.mrb[0].mxu0
  %v213 = vpop.f32.mrb[0].mxu0
  %v214 = vadd.f32 0.0, %v213
  %v215 = vpop.f32.mrb[0].mxu0
  %216 = vmatprep.mubr.bf16.mxu0 0
  %217 = vmatmul.mubr.bf16.gmra.mrb[0].mxu0 %v113
  %v218 = vpop.f32.mrb[0].mxu0
  %v219 = vadd.f32 0.0, %v218
  %v220 = vpop.f32.mrb[0].mxu0
  %v221 = vpop.f32.mrb[0].mxu0
  %v222 = vadd.f32 0.0, %v221
  %v223 = vpop.f32.mrb[0].mxu0
  %224 = vmatprep.mubr.bf16.mxu0 0
  %225 = vmatmul.mubr.bf16.gmra.mrb[0].mxu0 %v114
  %v226 = vpop.f32.mrb[0].mxu0
  %v227 = vadd.f32 0.0, %v226
  %v228 = vpop.f32.mrb[0].mxu0
  %v229 = vpop.f32.mrb[0].mxu0
  %v230 = vadd.f32 0.0, %v229
  %v231 = vpop.f32.mrb[0].mxu0
  %232 = vmatprep.mubr.bf16.mxu0 0
  %233 = vmatmul.mubr.bf16.gmra.mrb[0].mxu0 %v115
  %v234 = vpop.f32.mrb[0].mxu0
  %v235 = vadd.f32 0.0, %v234
  %v236 = vpop.f32.mrb[0].mxu0
  %v237 = vpop.f32.mrb[0].mxu0
  %v238 = vadd.f32 0.0, %v237
  %v239 = vpop.f32.mrb[0].mxu0
  %240 = vmatprep.mubr.bf16.mxu0 0
  %241 = vmatmul.mubr.bf16.gmra.mrb[0].mxu0 %v116
  %v242 = vpop.f32.mrb[0].mxu0
  %v243 = vadd.f32 0.0, %v242
  %v244 = vpop.f32.mrb[0].mxu0
  %v245 = vpop.f32.mrb[0].mxu0
  %v246 = vadd.f32 0.0, %v245
  %v247 = vpop.f32.mrb[0].mxu0
  %248 = vmatprep.mubr.bf16.mxu0 0
  %249 = vmatmul.mubr.bf16.gmra.mrb[0].mxu0 %v117
  %v250 = vpop.f32.mrb[0].mxu0
  %v251 = vadd.f32 0.0, %v250
  %v252 = vpop.f32.mrb[0].mxu0
  %v253 = vpop.f32.mrb[0].mxu0
  %v254 = vadd.f32 0.0, %v253
  %v255 = vpop.f32.mrb[0].mxu0
  %256 = vmatprep.mubr.bf16.mxu0 0
  %257 = vmatmul.mubr.bf16.gmra.mrb[0].mxu0 %v118
  %v258 = vpop.f32.mrb[0].mxu0
  %v259 = vadd.f32 0.0, %v258
  %v260 = vpop.f32.mrb[0].mxu0
  %v261 = vpop.f32.mrb[0].mxu0
  %v262 = vadd.f32 0.0, %v261
  %v263 = vpop.f32.mrb[0].mxu0
  %264 = vmatprep.mubr.bf16.mxu0 0
  %265 = vmatmul.mubr.bf16.gmra.mrb[0].mxu0 %v119
  %v266 = vpop.f32.mrb[0].mxu0
  %v267 = vadd.f32 0.0, %v266
  %v268 = vpop.f32.mrb[0].mxu0
  %v269 = vpop.f32.mrb[0].mxu0
  %v270 = vadd.f32 0.0, %v269
  %v271 = vpop.f32.mrb[0].mxu0
  %272 = vdwg.mxu0
  %v273 = vadd.f32 %v32, %v211
  %v274 = vadd.f32 %v33, %v214
  %v275 = vadd.f32 %v34, %v219
  %v276 = vadd.f32 %v35, %v222
  %v277 = vadd.f32 %v36, %v227
  %v278 = vadd.f32 %v37, %v230
  %v279 = vadd.f32 %v38, %v235
  %v280 = vadd.f32 %v39, %v238
  %v281 = vadd.f32 %v40, %v243
  %v282 = vadd.f32 %v41, %v246
  %v283 = vadd.f32 %v42, %v251
  %v284 = vadd.f32 %v43, %v254
  %v285 = vadd.f32 %v44, %v259
  %v286 = vadd.f32 %v45, %v262
  %v287 = vadd.f32 %v46, %v267
  %v288 = vadd.f32 %v47, %v270
  %289 = vst [vmem:[#allocation2] sm:$0xff] %v273
  %290 = vst [vmem:[#allocation2 + $0x8] sm:$0xff] %v274
  %291 = vst [vmem:[#allocation2 + $0x10] sm:$0xff] %v275
  %292 = vst [vmem:[#allocation2 + $0x18] sm:$0xff] %v276
  %293 = vst [vmem:[#allocation2 + $0x20] sm:$0xff] %v277
  %294 = vst [vmem:[#allocation2 + $0x28] sm:$0xff] %v278
  %295 = vst [vmem:[#allocation2 + $0x30] sm:$0xff] %v279
  %296 = vst [vmem:[#allocation2 + $0x38] sm:$0xff] %v280
  %297 = vst [vmem:[#allocation2 + $0x40] sm:$0xff] %v281
  %298 = vst [vmem:[#allocation2 + $0x48] sm:$0xff] %v282
  %299 = vst [vmem:[#allocation2 + $0x50] sm:$0xff] %v283
  %300 = vst [vmem:[#allocation2 + $0x58] sm:$0xff] %v284
  %301 = vst [vmem:[#allocation2 + $0x60] sm:$0xff] %v285
  %302 = vst [vmem:[#allocation2 + $0x68] sm:$0xff] %v286
  %303 = vst [vmem:[#allocation2 + $0x70] sm:$0xff] %v287
  %304 = vst [vmem:[#allocation2 + $0x78] sm:$0xff] %v288
  // Predicated region
  $region14: #{_lambda_.9} parent=0 // pred_check
    %p305 = pneg %p12
  $region15: #{_lambda_.9} parent=0 // pred_check_branch
    %307 = sbr.rel (%p305) target = $region17
  $region16: #{_lambda_.9} parent=0 // pred_region
    %v308 = vld [vmem:[#allocation2] sm:$0xff]
    %v309 = vld [vmem:[#allocation2 + $0x8] sm:$0xff]
    %v310 = vld [vmem:[#allocation2 + $0x10] sm:$0xff]
    %v311 = vld [vmem:[#allocation2 + $0x18] sm:$0xff]
    %v312 = vld [vmem:[#allocation2 + $0x20] sm:$0xff]
    %v313 = vld [vmem:[#allocation2 + $0x28] sm:$0xff]
    %v314 = vld [vmem:[#allocation2 + $0x30] sm:$0xff]
    %v315 = vld [vmem:[#allocation2 + $0x38] sm:$0xff]
    %v316 = vld [vmem:[#allocation2 + $0x40] sm:$0xff]
    %v317 = vld [vmem:[#allocation2 + $0x48] sm:$0xff]
    %v318 = vld [vmem:[#allocation2 + $0x50] sm:$0xff]
    %v319 = vld [vmem:[#allocation2 + $0x58] sm:$0xff]
    %v320 = vld [vmem:[#allocation2 + $0x60] sm:$0xff]
    %v321 = vld [vmem:[#allocation2 + $0x68] sm:$0xff]
    %v322 = vld [vmem:[#allocation2 + $0x70] sm:$0xff]
    %v323 = vld [vmem:[#allocation2 + $0x78] sm:$0xff]
    %324 = vst [vmem:[%s2] sm:$0xff] %v308
    %325 = vst [vmem:[%s2 + $0x8] sm:$0xff] %v309
    %326 = vst [vmem:[%s2 + $0x10] sm:$0xff] %v310
    %327 = vst [vmem:[%s2 + $0x18] sm:$0xff] %v311
    %328 = vst [vmem:[%s2 + $0x20] sm:$0xff] %v312
    %329 = vst [vmem:[%s2 + $0x28] sm:$0xff] %v313
    %330 = vst [vmem:[%s2 + $0x30] sm:$0xff] %v314
    %331 = vst [vmem:[%s2 + $0x38] sm:$0xff] %v315
    %332 = vst [vmem:[%s2 + $0x40] sm:$0xff] %v316
    %333 = vst [vmem:[%s2 + $0x48] sm:$0xff] %v317
    %334 = vst [vmem:[%s2 + $0x50] sm:$0xff] %v318
    %335 = vst [vmem:[%s2 + $0x58] sm:$0xff] %v319
    %336 = vst [vmem:[%s2 + $0x60] sm:$0xff] %v320
    %337 = vst [vmem:[%s2 + $0x68] sm:$0xff] %v321
    %338 = vst [vmem:[%s2 + $0x70] sm:$0xff] %v322
    %339 = vst [vmem:[%s2 + $0x78] sm:$0xff] %v323
  $region17: #{_lambda_.9} parent=0 // pred_fallthru
    _
  // Predicated region
  $region18: #{_lambda_.9} parent=0 // pred_check
    _
  $region19: #{_lambda_.9} parent=0 // pred_check_branch
    %341 = sbr.rel (0) target = $region21
  $region20: #{_lambda_.9} parent=0 // pred_region
    _
  $region21: #{_lambda_.9} parent=0 // pred_fallthru
    _
  // Predicated region
  $region22: #{_lambda_.9} parent=0 // pred_check
    _
  $region23: #{_lambda_.9} parent=0 // pred_check_branch
    %343 = sbr.rel (0) target = $region25
  $region24: #{_lambda_.9} parent=0 // pred_region
    _
  $region25: #{_lambda_.9} parent=0 // pred_fallthru
    _

</llo_original>
